<compile_context>
chip_gen: v7x
topology: tpu7x:2x2x1
jax: 0.10.0
libtpu: 0.0.40
codegen_flags: <defaults>
</compile_context>

<pallas_src>
import functools

import jax
import jax.numpy as jnp
from jax import lax
from jax.experimental import pallas as pl
from jax.experimental.pallas import tpu as pltpu


# ----------------------------- GLU block kernel -----------------------------

def _glu_kernel(xw_ref, wres_ref, bres_ref, wa_ref, ba_ref, wb_ref, bb_ref,
                wc_ref, bc_ref, o_ref, *, k, use_proj, cout):
    # xw_ref block: (1, 1, Cin, TS + k - 1)  -- left-halo'd / left-padded window
    xw = xw_ref[0, 0]                       # (Cin, TSp) f32
    TS = o_ref.shape[2]
    xw16 = xw.astype(jnp.bfloat16)

    # fused 1x1 conv-a for both branches: (2Cmid, Cin) @ (Cin, TSp)
    h = jnp.dot(wa_ref[...], xw16,
                preferred_element_type=jnp.float32) + ba_ref[...]   # (2Cmid, TSp)

    # causal (k,1) conv for both branches as ONE matmul: stack the k shifted
    # views along the contraction axis; weight is block-diagonal per tap.
    hstack = jnp.concatenate([h[:, j:j + TS] for j in range(k)],
                             axis=0).astype(jnp.bfloat16)           # (k*2Cmid, TS)
    acc = jnp.dot(wb_ref[...], hstack,
                  preferred_element_type=jnp.float32) + bb_ref[...]  # (2Cmid, TS)

    # fused 1x1 conv-c for both branches: (2Cout, 2Cmid) @ (2Cmid, TS)
    y = jnp.dot(wc_ref[...], acc.astype(jnp.bfloat16),
                preferred_element_type=jnp.float32) + bc_ref[...]    # (2Cout, TS)
    y1 = y[:cout, :]
    y2 = y[cout:, :]

    if use_proj:                            # convresid 1x1 projection residual
        res = jnp.dot(wres_ref[...], xw16[:, k - 1:],
                      preferred_element_type=jnp.float32) + bres_ref[...]
    else:
        res = xw[:, k - 1:]                 # identity residual (unpadded rows)

    o_ref[0] = y1 * jax.nn.sigmoid(y2) + res


def glu_block(x, pp, k):
    """x: (B, Cin, S) float32 -> (B, Cout, S) float32."""
    B, Cin, S = x.shape
    Cout = pp["wresT"].shape[0]
    use_proj = Cin != Cout

    # sequence tile (halo of k-1 rows baked into the windows)
    TS = S
    for cand in (1024, 512, 256, 128):
        if S % cand == 0:
            TS = cand
            break
    nT = S // TS
    TSp = TS + k - 1

    x_pad = jnp.pad(x, ((0, 0), (0, 0), (k - 1, 0)))        # causal left pad
    if nT == 1:
        xw = x_pad[:, None]                                  # (B, 1, Cin, TSp)
    else:
        idx = (jnp.arange(nT) * TS)[:, None] + jnp.arange(TSp)[None, :]
        xw = jnp.transpose(x_pad[:, :, idx], (0, 2, 1, 3))   # (B, nT, Cin, TSp)

    weights = [pp["wresT"], pp["bres"], pp["waT"], pp["ba"],
               pp["wbT"], pp["bb"], pp["wcT"], pp["bc"]]

    def wspec(a):
        nd = a.ndim
        return pl.BlockSpec(a.shape, lambda b, t, _n=nd: (0,) * _n)

    kernel = functools.partial(_glu_kernel, k=k, use_proj=use_proj, cout=Cout)
    return pl.pallas_call(
        kernel,
        out_shape=jax.ShapeDtypeStruct((B, Cout, S), jnp.float32),
        grid=(B, nT),
        in_specs=[pl.BlockSpec((1, 1, Cin, TSp), lambda b, t: (b, t, 0, 0))]
                 + [wspec(w) for w in weights],
        out_specs=pl.BlockSpec((1, Cout, TS), lambda b, t: (b, 0, t)),
        compiler_params=pltpu.CompilerParams(
            dimension_semantics=("parallel", "parallel")),
    )(xw, *weights)


# -------------------- AdaptiveLogSoftmaxWithLoss kernel ----------------------

def _asm_kernel(x_ref, t_ref, wbig_ref, wo1_ref, wo2_ref, out_ref, loss_ref,
                *, c0, c1, hs, h1, inv_n):
    i = pl.program_id(0)

    @pl.when(i == 0)
    def _():
        loss_ref[...] = jnp.zeros_like(loss_ref)

    X = x_ref[...]                          # (TN, nh) f32
    t = t_ref[...]                          # (TN, 1) int32 targets
    Xb = X.astype(jnp.bfloat16)

    # one fused projection: head logits + both tail projections
    proj = jnp.dot(Xb, wbig_ref[...],
                   preferred_element_type=jnp.float32)        # (TN, hs+h1+h2)
    head = proj[:, :hs]
    p1 = proj[:, hs:hs + h1].astype(jnp.bfloat16)
    p2 = proj[:, hs + h1:].astype(jnp.bfloat16)

    def log_softmax(z):
        m = jnp.max(z, axis=1, keepdims=True)
        return z - m - jnp.log(jnp.sum(jnp.exp(z - m), axis=1, keepdims=True))

    def pick(logprob, idx):                 # logprob[n, idx[n]] via one-hot mask
        iota = lax.broadcasted_iota(jnp.int32, logprob.shape, 1)
        return jnp.sum(jnp.where(iota == idx, logprob, 0.0),
                       axis=1, keepdims=True)

    # head: shortlist classes + one logit per tail cluster
    head_lp = log_softmax(head)
    gi = jnp.where(t < c0, t, jnp.where(t < c1, c0, c0 + 1))
    out = pick(head_lp, gi)

    # tail cluster 1 : classes [c0, c1)
    t1 = jnp.dot(p1, wo1_ref[...], preferred_element_type=jnp.float32)
    lp1 = pick(log_softmax(t1), t - c0)
    out = out + jnp.where(jnp.logical_and(t >= c0, t < c1), lp1, 0.0)

    # tail cluster 2 : classes [c1, vs)
    t2 = jnp.dot(p2, wo2_ref[...], preferred_element_type=jnp.float32)
    lp2 = pick(log_softmax(t2), t - c1)
    out = out + jnp.where(t >= c1, lp2, 0.0)

    out_ref[...] = out
    loss_ref[...] += jnp.sum(-out, axis=(0, 1), keepdims=True) * inv_n


def adaptive_logsoftmax_loss(x, target, p, c0, c1):
    N, nh = x.shape
    t = target.reshape(N, 1).astype(jnp.int32)

    TN = N
    for cand in (512, 256, 128):
        if N % cand == 0:
            TN = cand
            break
    n_tiles = N // TN

    wbig, wo1, wo2 = p["w_big"], p["w_o1"], p["w_o2"]
    h1 = wo1.shape[0]
    h2 = wo2.shape[0]
    hs = wbig.shape[1] - h1 - h2

    def wspec(a):
        nd = a.ndim
        return pl.BlockSpec(a.shape, lambda i, _n=nd: (0,) * _n)

    kernel = functools.partial(_asm_kernel, c0=c0, c1=c1, hs=hs, h1=h1,
                               inv_n=1.0 / N)
    out, loss = pl.pallas_call(
        kernel,
        out_shape=(jax.ShapeDtypeStruct((N, 1), jnp.float32),
                   jax.ShapeDtypeStruct((1, 1), jnp.float32)),
        grid=(n_tiles,),
        in_specs=[pl.BlockSpec((TN, nh), lambda i: (i, 0)),
                  pl.BlockSpec((TN, 1), lambda i: (i, 0)),
                  wspec(wbig), wspec(wo1), wspec(wo2)],
        out_specs=(pl.BlockSpec((TN, 1), lambda i: (i, 0)),
                   pl.BlockSpec((1, 1), lambda i: (0, 0))),
        compiler_params=pltpu.CompilerParams(
            dimension_semantics=("arbitrary",)),
    )(x, t, wbig, wo1, wo2)
    return out.reshape(N), loss.reshape(())


# ------------------------- parameter initialization -------------------------

def _weight_norm(key_v, key_g, shape, out_axis, scale=0.2):
    # weight_norm reparam: w = g * v / ||v||  (norm per output channel, dim=0)
    v = scale * jax.random.normal(key_v, shape, jnp.float32)
    g = jax.random.uniform(key_g, (shape[out_axis],), jnp.float32, 0.5, 1.5)
    axes = tuple(a for a in range(len(shape)) if a != out_axis)
    norm = jnp.sqrt(jnp.sum(v * v, axis=axes, keepdims=True))
    gshape = [1] * len(shape)
    gshape[out_axis] = shape[out_axis]
    return g.reshape(gshape) * v / norm


def make_glu_params(key, k, in_c, out_c, downbot):
    mid = int(in_c / downbot)
    ks = jax.random.split(key, 21)

    def conv1x1(i, ci, co):
        w = _weight_norm(ks[i], ks[i + 1], (ci, co), out_axis=1)
        b = 0.05 * jax.random.normal(ks[i + 2], (1, co), jnp.float32)
        return w, b

    def convk(i, c):
        w = _weight_norm(ks[i], ks[i + 1], (k, c, c), out_axis=2)
        b = 0.05 * jax.random.normal(ks[i + 2], (1, c), jnp.float32)
        return w, b

    wres, bres = conv1x1(0, in_c, out_c)
    w1a, b1a = conv1x1(3, in_c, mid)
    w2a, b2a = conv1x1(6, in_c, mid)
    w1b, b1b = convk(9, mid)
    w2b, b2b = convk(12, mid)
    w1c, b1c = conv1x1(15, mid, out_c)
    w2c, b2c = conv1x1(18, mid, out_c)
    return dict(wres=wres, bres=bres,
                w1a=w1a, b1a=b1a, w1b=w1b, b1b=b1b, w1c=w1c, b1c=b1c,
                w2a=w2a, b2a=b2a, w2b=w2b, b2b=b2b, w2c=w2c, b2c=b2c)


def pack_glu_params(raw, k):
    """Fuse both GLU branches + k conv taps into dense bf16 matmul weights."""
    cmid = raw["w1a"].shape[1]
    cout = raw["w1c"].shape[1]

    waT = jnp.concatenate([raw["w1a"], raw["w2a"]], axis=1).T        # (2Cmid, Cin)
    ba = jnp.concatenate([raw["b1a"], raw["b2a"]], axis=1).T          # (2Cmid, 1)

    z = jnp.zeros((cmid, cmid), jnp.float32)
    taps = []
    for j in range(k):                       # block-diag over branches, per tap
        top = jnp.concatenate([raw["w1b"][j], z], axis=1)
        bot = jnp.concatenate([z, raw["w2b"][j]], axis=1)
        taps.append(jnp.concatenate([top, bot], axis=0))              # (2Cmid, 2Cmid)
    wbT = jnp.concatenate(taps, axis=0).T                             # (2Cmid, k*2Cmid)
    bb = jnp.concatenate([raw["b1b"], raw["b2b"]], axis=1).T          # (2Cmid, 1)

    zc = jnp.zeros((cmid, cout), jnp.float32)
    wc_big = jnp.concatenate(
        [jnp.concatenate([raw["w1c"], zc], axis=1),
         jnp.concatenate([zc, raw["w2c"]], axis=1)], axis=0)          # (2Cmid, 2Cout)
    wcT = wc_big.T                                                    # (2Cout, 2Cmid)
    bc = jnp.concatenate([raw["b1c"], raw["b2c"]], axis=1).T          # (2Cout, 1)

    return dict(
        waT=waT.astype(jnp.bfloat16), ba=ba,
        wbT=wbT.astype(jnp.bfloat16), bb=bb,
        wcT=wcT.astype(jnp.bfloat16), bc=bc,
        wresT=raw["wres"].T.astype(jnp.bfloat16), bres=raw["bres"].T)


def make_asm_params(key, nh, vs, c0, c1, div_value=4):
    ks = jax.random.split(key, 5)
    head_size = c0 + 2                     # shortlist + 2 cluster logits
    h1 = nh // div_value
    h2 = nh // (div_value ** 2)
    s = 0.2
    w_head = s * jax.random.normal(ks[0], (nh, head_size), jnp.float32)
    w_p1 = s * jax.random.normal(ks[1], (nh, h1), jnp.float32)
    w_o1 = s * jax.random.normal(ks[2], (h1, c1 - c0), jnp.float32)
    w_p2 = s * jax.random.normal(ks[3], (nh, h2), jnp.float32)
    w_o2 = s * jax.random.normal(ks[4], (h2, vs - c1), jnp.float32)
    return dict(
        w_big=jnp.concatenate([w_head, w_p1, w_p2], axis=1).astype(jnp.bfloat16),
        w_o1=w_o1.astype(jnp.bfloat16),
        w_o2=w_o2.astype(jnp.bfloat16))


# --------------------------------- forward ----------------------------------

def gcnn_forward(tokens, params, *, k, c0, c1):
    # tokens: (L, B) int32; matches torch: target = x[1:], input = x[:-1]
    target = tokens[1:, :].reshape(-1)                 # (S*B,) row order s*B+b
    inp = tokens[:-1, :]                               # (S, B)
    h = jnp.transpose(params["embed"][inp], (1, 2, 0))  # (B, emb, S) channels-first
    h = glu_block(h, params["inlayer"], k)
    for lp in params["layers"]:
        h = glu_block(h, lp, k)
    # (B, nh, S) -> (S, B, nh) -> (S*B, nh)  (same row order as torch .view)
    feats = jnp.transpose(h, (2, 0, 1)).reshape(-1, h.shape[1])
    return adaptive_logsoftmax_loss(feats, target, params["asm"], c0, c1)


if __name__ == "__main__":
    vs, emb_sz, k, nh, nl, downbot = 100, 16, 3, 32, 2, 4
    L, B = 9, 2                                        # seq length 9 -> S = 8
    c0 = int(round(vs / 25))                           # 4
    c1 = int(round(vs / 5))                            # 20

    root = jax.random.PRNGKey(0)
    k_emb, k_in, k_layers, k_asm, k_tok = jax.random.split(root, 5)
    params = dict(
        embed=jax.random.normal(k_emb, (vs, emb_sz), jnp.float32),
        inlayer=pack_glu_params(make_glu_params(k_in, k, emb_sz, nh, downbot), k),
        layers=[pack_glu_params(make_glu_params(kk, k, nh, nh, downbot), k)
                for kk in jax.random.split(k_layers, nl)],
        asm=make_asm_params(k_asm, nh, vs, c0, c1),
    )
    tokens = jax.random.randint(k_tok, (L, B), 0, vs, dtype=jnp.int32)

    fwd = jax.jit(functools.partial(gcnn_forward, k=k, c0=c0, c1=c1))
    out_logprob, loss = fwd(tokens, params)
    jax.block_until_ready((out_logprob, loss))
    print("KERNEL_OK")
</pallas_src>

<mosaic_0001>
module attributes {stable_mosaic.version = 11 : i64} {
  func.func @_glu_kernel(%arg0: i32, %arg1: i32, %arg2: memref<1x1x16x10xf32, #tpu.memory_space<vmem>>, %arg3: memref<32x16xbf16, #tpu.memory_space<vmem>>, %arg4: memref<32x1xf32, #tpu.memory_space<vmem>>, %arg5: memref<8x16xbf16, #tpu.memory_space<vmem>>, %arg6: memref<8x1xf32, #tpu.memory_space<vmem>>, %arg7: memref<8x24xbf16, #tpu.memory_space<vmem>>, %arg8: memref<8x1xf32, #tpu.memory_space<vmem>>, %arg9: memref<64x8xbf16, #tpu.memory_space<vmem>>, %arg10: memref<64x1xf32, #tpu.memory_space<vmem>>, %arg11: memref<1x32x8xf32, #tpu.memory_space<vmem>>) attributes {dimension_semantics = [#tpu.dimension_semantics<parallel>, #tpu.dimension_semantics<parallel>], iteration_bounds = array<i64: 2, 1>, scalar_prefetch = 0 : i64, scratch_operands = 0 : i64, tpu.core_type = #tpu.core_type<tc>, window_params = [{transform_indices = @transform_0, window_bounds = array<i64: 1, 1, 16, 10>}, {pipeline_mode = #tpu.pipeline_mode<synchronous>, transform_indices = @transform_1, window_bounds = array<i64: 32, 16>}, {pipeline_mode = #tpu.pipeline_mode<synchronous>, transform_indices = @transform_2, window_bounds = array<i64: 32, 1>}, {pipeline_mode = #tpu.pipeline_mode<synchronous>, transform_indices = @transform_3, window_bounds = array<i64: 8, 16>}, {pipeline_mode = #tpu.pipeline_mode<synchronous>, transform_indices = @transform_4, window_bounds = array<i64: 8, 1>}, {pipeline_mode = #tpu.pipeline_mode<synchronous>, transform_indices = @transform_5, window_bounds = array<i64: 8, 24>}, {pipeline_mode = #tpu.pipeline_mode<synchronous>, transform_indices = @transform_6, window_bounds = array<i64: 8, 1>}, {pipeline_mode = #tpu.pipeline_mode<synchronous>, transform_indices = @transform_7, window_bounds = array<i64: 64, 8>}, {pipeline_mode = #tpu.pipeline_mode<synchronous>, transform_indices = @transform_8, window_bounds = array<i64: 64, 1>}, {transform_indices = @transform_9, window_bounds = array<i64: 1, 32, 8>}]} {
    %c0 = arith.constant 0 : index
    %c0_0 = arith.constant 0 : index
    %c0_1 = arith.constant 0 : index
    %c0_2 = arith.constant 0 : index
    %0 = vector.load %arg2[%c0, %c0_0, %c0_1, %c0_2] : memref<1x1x16x10xf32, #tpu.memory_space<vmem>>, vector<1x1x16x10xf32>
    %1 = vector.shape_cast %0 : vector<1x1x16x10xf32> to vector<16x10xf32>
    %2 = arith.truncf %1 : vector<16x10xf32> to vector<16x10xbf16>
    %c0_3 = arith.constant 0 : index
    %c0_4 = arith.constant 0 : index
    %3 = vector.load %arg5[%c0_3, %c0_4] : memref<8x16xbf16, #tpu.memory_space<vmem>>, vector<8x16xbf16>
    %cst = arith.constant dense<0.000000e+00> : vector<8x10xf32>
    %4 = tpu.matmul %3, %2, %cst {dimension_numbers = #tpu.dot_dimension_numbers<[1], [0], [0], [1], [0, 0, 1, 1], [], []>} : vector<8x16xbf16>, vector<16x10xbf16>, vector<8x10xf32> -> vector<8x10xf32>
    %c0_5 = arith.constant 0 : index
    %c0_6 = arith.constant 0 : index
    %5 = vector.load %arg6[%c0_5, %c0_6] : memref<8x1xf32, #tpu.memory_space<vmem>>, vector<8x1xf32>
    %6 = vector.broadcast %5 : vector<8x1xf32> to vector<8x10xf32>
    %7 = arith.addf %4, %6 : vector<8x10xf32>
    %8 = vector.extract_strided_slice %7 {offsets = [0, 0], sizes = [8, 8], strides = [1, 1]} : vector<8x10xf32> to vector<8x8xf32>
    %9 = vector.extract_strided_slice %7 {offsets = [0, 1], sizes = [8, 8], strides = [1, 1]} : vector<8x10xf32> to vector<8x8xf32>
    %10 = vector.extract_strided_slice %7 {offsets = [0, 2], sizes = [8, 8], strides = [1, 1]} : vector<8x10xf32> to vector<8x8xf32>
    %11 = tpu.concatenate %8, %9, %10 in 0 : vector<8x8xf32>, vector<8x8xf32>, vector<8x8xf32> -> vector<24x8xf32>
    %12 = arith.truncf %11 : vector<24x8xf32> to vector<24x8xbf16>
    %c0_7 = arith.constant 0 : index
    %c0_8 = arith.constant 0 : index
    %13 = vector.load %arg7[%c0_7, %c0_8] : memref<8x24xbf16, #tpu.memory_space<vmem>>, vector<8x24xbf16>
    %cst_9 = arith.constant dense<0.000000e+00> : vector<8x8xf32>
    %14 = tpu.matmul %13, %12, %cst_9 {dimension_numbers = #tpu.dot_dimension_numbers<[1], [0], [0], [1], [0, 0, 1, 1], [], []>} : vector<8x24xbf16>, vector<24x8xbf16>, vector<8x8xf32> -> vector<8x8xf32>
    %c0_10 = arith.constant 0 : index
    %c0_11 = arith.constant 0 : index
    %15 = vector.load %arg8[%c0_10, %c0_11] : memref<8x1xf32, #tpu.memory_space<vmem>>, vector<8x1xf32>
    %16 = vector.broadcast %15 : vector<8x1xf32> to vector<8x8xf32>
    %17 = arith.addf %14, %16 : vector<8x8xf32>
    %c0_12 = arith.constant 0 : index
    %c0_13 = arith.constant 0 : index
    %18 = vector.load %arg9[%c0_12, %c0_13] : memref<64x8xbf16, #tpu.memory_space<vmem>>, vector<64x8xbf16>
    %19 = arith.truncf %17 : vector<8x8xf32> to vector<8x8xbf16>
    %cst_14 = arith.constant dense<0.000000e+00> : vector<64x8xf32>
    %20 = tpu.matmul %18, %19, %cst_14 {dimension_numbers = #tpu.dot_dimension_numbers<[1], [0], [0], [1], [0, 0, 1, 1], [], []>} : vector<64x8xbf16>, vector<8x8xbf16>, vector<64x8xf32> -> vector<64x8xf32>
    %c0_15 = arith.constant 0 : index
    %c0_16 = arith.constant 0 : index
    %21 = vector.load %arg10[%c0_15, %c0_16] : memref<64x1xf32, #tpu.memory_space<vmem>>, vector<64x1xf32>
    %22 = vector.broadcast %21 : vector<64x1xf32> to vector<64x8xf32>
    %23 = arith.addf %20, %22 : vector<64x8xf32>
    %24 = vector.extract_strided_slice %23 {offsets = [0, 0], sizes = [32, 8], strides = [1, 1]} : vector<64x8xf32> to vector<32x8xf32>
    %25 = vector.extract_strided_slice %23 {offsets = [32, 0], sizes = [32, 8], strides = [1, 1]} : vector<64x8xf32> to vector<32x8xf32>
    %c0_17 = arith.constant 0 : index
    %c0_18 = arith.constant 0 : index
    %26 = vector.load %arg3[%c0_17, %c0_18] : memref<32x16xbf16, #tpu.memory_space<vmem>>, vector<32x16xbf16>
    %27 = vector.extract_strided_slice %2 {offsets = [0, 2], sizes = [16, 8], strides = [1, 1]} : vector<16x10xbf16> to vector<16x8xbf16>
    %cst_19 = arith.constant dense<0.000000e+00> : vector<32x8xf32>
    %28 = tpu.matmul %26, %27, %cst_19 {dimension_numbers = #tpu.dot_dimension_numbers<[1], [0], [0], [1], [0, 0, 1, 1], [], []>} : vector<32x16xbf16>, vector<16x8xbf16>, vector<32x8xf32> -> vector<32x8xf32>
    %c0_20 = arith.constant 0 : index
    %c0_21 = arith.constant 0 : index
    %29 = vector.load %arg4[%c0_20, %c0_21] : memref<32x1xf32, #tpu.memory_space<vmem>>, vector<32x1xf32>
    %30 = vector.broadcast %29 : vector<32x1xf32> to vector<32x8xf32>
    %31 = arith.addf %28, %30 : vector<32x8xf32>
    %32 = arith.negf %25 : vector<32x8xf32>
    %33 = math.exp %32 : vector<32x8xf32>
    %cst_22 = arith.constant 1.000000e+00 : f32
    %34 = vector.broadcast %cst_22 : f32 to vector<32x8xf32>
    %35 = arith.addf %34, %33 : vector<32x8xf32>
    %36 = arith.divf %34, %35 : vector<32x8xf32>
    %37 = arith.mulf %24, %36 : vector<32x8xf32>
    %38 = arith.addf %37, %31 : vector<32x8xf32>
    %c0_23 = arith.constant 0 : index
    %c0_24 = arith.constant 0 : index
    %c0_25 = arith.constant 0 : index
    %39 = vector.load %arg11[%c0_23, %c0_24, %c0_25] : memref<1x32x8xf32, #tpu.memory_space<vmem>>, vector<1x32x8xf32>
    %40 = vector.shape_cast %39 : vector<1x32x8xf32> to vector<32x8xf32>
    %41 = vector.shape_cast %38 : vector<32x8xf32> to vector<1x32x8xf32>
    tpu.vector_store %arg11[%c0_23, %c0_24, %c0_25], %41 {strides = array<i32>} : memref<1x32x8xf32, #tpu.memory_space<vmem>>, vector<1x32x8xf32>,
    return
  }
  func.func @transform_0(%arg0: i32, %arg1: i32) -> (i32, i32, i32, i32) {
    %c0_i32 = arith.constant 0 : i32
    %c0_i32_0 = arith.constant 0 : i32
    %c0_i32_1 = arith.constant 0 : i32
    return %arg0, %arg1, %c0_i32, %c0_i32_0 : i32, i32, i32, i32
  }
  func.func @transform_1(%arg0: i32, %arg1: i32) -> (i32, i32) {
    %c0_i32 = arith.constant 0 : i32
    %c0_i32_0 = arith.constant 0 : i32
    %c0_i32_1 = arith.constant 0 : i32
    return %c0_i32, %c0_i32_0 : i32, i32
  }
  func.func @transform_2(%arg0: i32, %arg1: i32) -> (i32, i32) {
    %c0_i32 = arith.constant 0 : i32
    %c0_i32_0 = arith.constant 0 : i32
    %c0_i32_1 = arith.constant 0 : i32
    return %c0_i32, %c0_i32_0 : i32, i32
  }
  func.func @transform_3(%arg0: i32, %arg1: i32) -> (i32, i32) {
    %c0_i32 = arith.constant 0 : i32
    %c0_i32_0 = arith.constant 0 : i32
    %c0_i32_1 = arith.constant 0 : i32
    return %c0_i32, %c0_i32_0 : i32, i32
  }
  func.func @transform_4(%arg0: i32, %arg1: i32) -> (i32, i32) {
    %c0_i32 = arith.constant 0 : i32
    %c0_i32_0 = arith.constant 0 : i32
    %c0_i32_1 = arith.constant 0 : i32
    return %c0_i32, %c0_i32_0 : i32, i32
  }
  func.func @transform_5(%arg0: i32, %arg1: i32) -> (i32, i32) {
    %c0_i32 = arith.constant 0 : i32
    %c0_i32_0 = arith.constant 0 : i32
    %c0_i32_1 = arith.constant 0 : i32
    return %c0_i32, %c0_i32_0 : i32, i32
  }
  func.func @transform_6(%arg0: i32, %arg1: i32) -> (i32, i32) {
    %c0_i32 = arith.constant 0 : i32
    %c0_i32_0 = arith.constant 0 : i32
    %c0_i32_1 = arith.constant 0 : i32
    return %c0_i32, %c0_i32_0 : i32, i32
  }
  func.func @transform_7(%arg0: i32, %arg1: i32) -> (i32, i32) {
    %c0_i32 = arith.constant 0 : i32
    %c0_i32_0 = arith.constant 0 : i32
    %c0_i32_1 = arith.constant 0 : i32
    return %c0_i32, %c0_i32_0 : i32, i32
  }
  func.func @transform_8(%arg0: i32, %arg1: i32) -> (i32, i32) {
    %c0_i32 = arith.constant 0 : i32
    %c0_i32_0 = arith.constant 0 : i32
    %c0_i32_1 = arith.constant 0 : i32
    return %c0_i32, %c0_i32_0 : i32, i32
  }
  func.func @transform_9(%arg0: i32, %arg1: i32) -> (i32, i32, i32) {
    %c0_i32 = arith.constant 0 : i32
    %c0_i32_0 = arith.constant 0 : i32
    return %arg0, %c0_i32, %arg1 : i32, i32, i32
  }
}

module attributes {stable_mosaic.version = 11 : i64} {
  func.func @_glu_kernel(%arg0: i32, %arg1: i32, %arg2: memref<1x1x32x10xf32, #tpu.memory_space<vmem>>, %arg3: memref<32x32xbf16, #tpu.memory_space<vmem>>, %arg4: memref<32x1xf32, #tpu.memory_space<vmem>>, %arg5: memref<16x32xbf16, #tpu.memory_space<vmem>>, %arg6: memref<16x1xf32, #tpu.memory_space<vmem>>, %arg7: memref<16x48xbf16, #tpu.memory_space<vmem>>, %arg8: memref<16x1xf32, #tpu.memory_space<vmem>>, %arg9: memref<64x16xbf16, #tpu.memory_space<vmem>>, %arg10: memref<64x1xf32, #tpu.memory_space<vmem>>, %arg11: memref<1x32x8xf32, #tpu.memory_space<vmem>>) attributes {dimension_semantics = [#tpu.dimension_semantics<parallel>, #tpu.dimension_semantics<parallel>], iteration_bounds = array<i64: 2, 1>, scalar_prefetch = 0 : i64, scratch_operands = 0 : i64, tpu.core_type = #tpu.core_type<tc>, window_params = [{transform_indices = @transform_0, window_bounds = array<i64: 1, 1, 32, 10>}, {pipeline_mode = #tpu.pipeline_mode<synchronous>, transform_indices = @transform_1, window_bounds = array<i64: 32, 32>}, {pipeline_mode = #tpu.pipeline_mode<synchronous>, transform_indices = @transform_2, window_bounds = array<i64: 32, 1>}, {pipeline_mode = #tpu.pipeline_mode<synchronous>, transform_indices = @transform_3, window_bounds = array<i64: 16, 32>}, {pipeline_mode = #tpu.pipeline_mode<synchronous>, transform_indices = @transform_4, window_bounds = array<i64: 16, 1>}, {pipeline_mode = #tpu.pipeline_mode<synchronous>, transform_indices = @transform_5, window_bounds = array<i64: 16, 48>}, {pipeline_mode = #tpu.pipeline_mode<synchronous>, transform_indices = @transform_6, window_bounds = array<i64: 16, 1>}, {pipeline_mode = #tpu.pipeline_mode<synchronous>, transform_indices = @transform_7, window_bounds = array<i64: 64, 16>}, {pipeline_mode = #tpu.pipeline_mode<synchronous>, transform_indices = @transform_8, window_bounds = array<i64: 64, 1>}, {transform_indices = @transform_9, window_bounds = array<i64: 1, 32, 8>}]} {
    %c0 = arith.constant 0 : index
    %c0_0 = arith.constant 0 : index
    %c0_1 = arith.constant 0 : index
    %c0_2 = arith.constant 0 : index
    %0 = vector.load %arg2[%c0, %c0_0, %c0_1, %c0_2] : memref<1x1x32x10xf32, #tpu.memory_space<vmem>>, vector<1x1x32x10xf32>
    %1 = vector.shape_cast %0 : vector<1x1x32x10xf32> to vector<32x10xf32>
    %2 = arith.truncf %1 : vector<32x10xf32> to vector<32x10xbf16>
    %c0_3 = arith.constant 0 : index
    %c0_4 = arith.constant 0 : index
    %3 = vector.load %arg5[%c0_3, %c0_4] : memref<16x32xbf16, #tpu.memory_space<vmem>>, vector<16x32xbf16>
    %cst = arith.constant dense<0.000000e+00> : vector<16x10xf32>
    %4 = tpu.matmul %3, %2, %cst {dimension_numbers = #tpu.dot_dimension_numbers<[1], [0], [0], [1], [0, 0, 1, 1], [], []>} : vector<16x32xbf16>, vector<32x10xbf16>, vector<16x10xf32> -> vector<16x10xf32>
    %c0_5 = arith.constant 0 : index
    %c0_6 = arith.constant 0 : index
    %5 = vector.load %arg6[%c0_5, %c0_6] : memref<16x1xf32, #tpu.memory_space<vmem>>, vector<16x1xf32>
    %6 = vector.broadcast %5 : vector<16x1xf32> to vector<16x10xf32>
    %7 = arith.addf %4, %6 : vector<16x10xf32>
    %8 = vector.extract_strided_slice %7 {offsets = [0, 0], sizes = [16, 8], strides = [1, 1]} : vector<16x10xf32> to vector<16x8xf32>
    %9 = vector.extract_strided_slice %7 {offsets = [0, 1], sizes = [16, 8], strides = [1, 1]} : vector<16x10xf32> to vector<16x8xf32>
    %10 = vector.extract_strided_slice %7 {offsets = [0, 2], sizes = [16, 8], strides = [1, 1]} : vector<16x10xf32> to vector<16x8xf32>
    %11 = tpu.concatenate %8, %9, %10 in 0 : vector<16x8xf32>, vector<16x8xf32>, vector<16x8xf32> -> vector<48x8xf32>
    %12 = arith.truncf %11 : vector<48x8xf32> to vector<48x8xbf16>
    %c0_7 = arith.constant 0 : index
    %c0_8 = arith.constant 0 : index
    %13 = vector.load %arg7[%c0_7, %c0_8] : memref<16x48xbf16, #tpu.memory_space<vmem>>, vector<16x48xbf16>
    %cst_9 = arith.constant dense<0.000000e+00> : vector<16x8xf32>
    %14 = tpu.matmul %13, %12, %cst_9 {dimension_numbers = #tpu.dot_dimension_numbers<[1], [0], [0], [1], [0, 0, 1, 1], [], []>} : vector<16x48xbf16>, vector<48x8xbf16>, vector<16x8xf32> -> vector<16x8xf32>
    %c0_10 = arith.constant 0 : index
    %c0_11 = arith.constant 0 : index
    %15 = vector.load %arg8[%c0_10, %c0_11] : memref<16x1xf32, #tpu.memory_space<vmem>>, vector<16x1xf32>
    %16 = vector.broadcast %15 : vector<16x1xf32> to vector<16x8xf32>
    %17 = arith.addf %14, %16 : vector<16x8xf32>
    %c0_12 = arith.constant 0 : index
    %c0_13 = arith.constant 0 : index
    %18 = vector.load %arg9[%c0_12, %c0_13] : memref<64x16xbf16, #tpu.memory_space<vmem>>, vector<64x16xbf16>
    %19 = arith.truncf %17 : vector<16x8xf32> to vector<16x8xbf16>
    %cst_14 = arith.constant dense<0.000000e+00> : vector<64x8xf32>
    %20 = tpu.matmul %18, %19, %cst_14 {dimension_numbers = #tpu.dot_dimension_numbers<[1], [0], [0], [1], [0, 0, 1, 1], [], []>} : vector<64x16xbf16>, vector<16x8xbf16>, vector<64x8xf32> -> vector<64x8xf32>
    %c0_15 = arith.constant 0 : index
    %c0_16 = arith.constant 0 : index
    %21 = vector.load %arg10[%c0_15, %c0_16] : memref<64x1xf32, #tpu.memory_space<vmem>>, vector<64x1xf32>
    %22 = vector.broadcast %21 : vector<64x1xf32> to vector<64x8xf32>
    %23 = arith.addf %20, %22 : vector<64x8xf32>
    %24 = vector.extract_strided_slice %23 {offsets = [0, 0], sizes = [32, 8], strides = [1, 1]} : vector<64x8xf32> to vector<32x8xf32>
    %25 = vector.extract_strided_slice %23 {offsets = [32, 0], sizes = [32, 8], strides = [1, 1]} : vector<64x8xf32> to vector<32x8xf32>
    %26 = vector.extract_strided_slice %1 {offsets = [0, 2], sizes = [32, 8], strides = [1, 1]} : vector<32x10xf32> to vector<32x8xf32>
    %27 = arith.negf %25 : vector<32x8xf32>
    %28 = math.exp %27 : vector<32x8xf32>
    %cst_17 = arith.constant 1.000000e+00 : f32
    %29 = vector.broadcast %cst_17 : f32 to vector<32x8xf32>
    %30 = arith.addf %29, %28 : vector<32x8xf32>
    %31 = arith.divf %29, %30 : vector<32x8xf32>
    %32 = arith.mulf %24, %31 : vector<32x8xf32>
    %33 = arith.addf %32, %26 : vector<32x8xf32>
    %c0_18 = arith.constant 0 : index
    %c0_19 = arith.constant 0 : index
    %c0_20 = arith.constant 0 : index
    %34 = vector.load %arg11[%c0_18, %c0_19, %c0_20] : memref<1x32x8xf32, #tpu.memory_space<vmem>>, vector<1x32x8xf32>
    %35 = vector.shape_cast %34 : vector<1x32x8xf32> to vector<32x8xf32>
    %36 = vector.shape_cast %33 : vector<32x8xf32> to vector<1x32x8xf32>
    tpu.vector_store %arg11[%c0_18, %c0_19, %c0_20], %36 {strides = array<i32>} : memref<1x32x8xf32, #tpu.memory_space<vmem>>, vector<1x32x8xf32>,
    return
  }
  func.func @transform_0(%arg0: i32, %arg1: i32) -> (i32, i32, i32, i32) {
    %c0_i32 = arith.constant 0 : i32
    %c0_i32_0 = arith.constant 0 : i32
    %c0_i32_1 = arith.constant 0 : i32
    return %arg0, %arg1, %c0_i32, %c0_i32_0 : i32, i32, i32, i32
  }
  func.func @transform_1(%arg0: i32, %arg1: i32) -> (i32, i32) {
    %c0_i32 = arith.constant 0 : i32
    %c0_i32_0 = arith.constant 0 : i32
    %c0_i32_1 = arith.constant 0 : i32
    return %c0_i32, %c0_i32_0 : i32, i32
  }
  func.func @transform_2(%arg0: i32, %arg1: i32) -> (i32, i32) {
    %c0_i32 = arith.constant 0 : i32
    %c0_i32_0 = arith.constant 0 : i32
    %c0_i32_1 = arith.constant 0 : i32
    return %c0_i32, %c0_i32_0 : i32, i32
  }
  func.func @transform_3(%arg0: i32, %arg1: i32) -> (i32, i32) {
    %c0_i32 = arith.constant 0 : i32
    %c0_i32_0 = arith.constant 0 : i32
    %c0_i32_1 = arith.constant 0 : i32
    return %c0_i32, %c0_i32_0 : i32, i32
  }
  func.func @transform_4(%arg0: i32, %arg1: i32) -> (i32, i32) {
    %c0_i32 = arith.constant 0 : i32
    %c0_i32_0 = arith.constant 0 : i32
    %c0_i32_1 = arith.constant 0 : i32
    return %c0_i32, %c0_i32_0 : i32, i32
  }
  func.func @transform_5(%arg0: i32, %arg1: i32) -> (i32, i32) {
    %c0_i32 = arith.constant 0 : i32
    %c0_i32_0 = arith.constant 0 : i32
    %c0_i32_1 = arith.constant 0 : i32
    return %c0_i32, %c0_i32_0 : i32, i32
  }
  func.func @transform_6(%arg0: i32, %arg1: i32) -> (i32, i32) {
    %c0_i32 = arith.constant 0 : i32
    %c0_i32_0 = arith.constant 0 : i32
    %c0_i32_1 = arith.constant 0 : i32
    return %c0_i32, %c0_i32_0 : i32, i32
  }
  func.func @transform_7(%arg0: i32, %arg1: i32) -> (i32, i32) {
    %c0_i32 = arith.constant 0 : i32
    %c0_i32_0 = arith.constant 0 : i32
    %c0_i32_1 = arith.constant 0 : i32
    return %c0_i32, %c0_i32_0 : i32, i32
  }
  func.func @transform_8(%arg0: i32, %arg1: i32) -> (i32, i32) {
    %c0_i32 = arith.constant 0 : i32
    %c0_i32_0 = arith.constant 0 : i32
    %c0_i32_1 = arith.constant 0 : i32
    return %c0_i32, %c0_i32_0 : i32, i32
  }
  func.func @transform_9(%arg0: i32, %arg1: i32) -> (i32, i32, i32) {
    %c0_i32 = arith.constant 0 : i32
    %c0_i32_0 = arith.constant 0 : i32
    return %arg0, %c0_i32, %arg1 : i32, i32, i32
  }
}

module attributes {stable_mosaic.version = 11 : i64} {
  func.func @_asm_kernel(%arg0: i32, %arg1: memref<16x32xf32, #tpu.memory_space<vmem>>, %arg2: memref<16x1xi32, #tpu.memory_space<vmem>>, %arg3: memref<32x16xbf16, #tpu.memory_space<vmem>>, %arg4: memref<8x16xbf16, #tpu.memory_space<vmem>>, %arg5: memref<2x80xbf16, #tpu.memory_space<vmem>>, %arg6: memref<16x1xf32, #tpu.memory_space<vmem>>, %arg7: memref<1x1xf32, #tpu.memory_space<vmem>>) attributes {dimension_semantics = [#tpu.dimension_semantics<arbitrary>], iteration_bounds = array<i64: 1>, scalar_prefetch = 0 : i64, scratch_operands = 0 : i64, tpu.core_type = #tpu.core_type<tc>, window_params = [{transform_indices = @transform_0, window_bounds = array<i64: 16, 32>}, {transform_indices = @transform_1, window_bounds = array<i64: 16, 1>}, {pipeline_mode = #tpu.pipeline_mode<synchronous>, transform_indices = @transform_2, window_bounds = array<i64: 32, 16>}, {pipeline_mode = #tpu.pipeline_mode<synchronous>, transform_indices = @transform_3, window_bounds = array<i64: 8, 16>}, {pipeline_mode = #tpu.pipeline_mode<synchronous>, transform_indices = @transform_4, window_bounds = array<i64: 2, 80>}, {transform_indices = @transform_5, window_bounds = array<i64: 16, 1>}, {pipeline_mode = #tpu.pipeline_mode<synchronous>, transform_indices = @transform_6, window_bounds = array<i64: 1, 1>}]} {
    %c0_i32 = arith.constant 0 : i32
    %0 = arith.cmpi eq, %arg0, %c0_i32 : i32
    %1 = arith.extui %0 : i1 to i32
    %c0_i32_0 = arith.constant 0 : i32
    %2 = arith.cmpi ne, %1, %c0_i32_0 : i32
    scf.if %2 {
      %cst_41 = arith.constant 0.000000e+00 : f32
      %112 = vector.broadcast %cst_41 : f32 to vector<1x1xf32>
      %c0_42 = arith.constant 0 : index
      %c0_43 = arith.constant 0 : index
      %113 = vector.load %arg7[%c0_42, %c0_43] : memref<1x1xf32, #tpu.memory_space<vmem>>, vector<1x1xf32>
      tpu.vector_store %arg7[%c0_42, %c0_43], %112 {strides = array<i32>} : memref<1x1xf32, #tpu.memory_space<vmem>>, vector<1x1xf32>,
    } else {
    }
    %c0 = arith.constant 0 : index
    %c0_1 = arith.constant 0 : index
    %3 = vector.load %arg1[%c0, %c0_1] : memref<16x32xf32, #tpu.memory_space<vmem>>, vector<16x32xf32>
    %c0_2 = arith.constant 0 : index
    %c0_3 = arith.constant 0 : index
    %4 = vector.load %arg2[%c0_2, %c0_3] : memref<16x1xi32, #tpu.memory_space<vmem>>, vector<16x1xi32>
    %5 = arith.truncf %3 : vector<16x32xf32> to vector<16x32xbf16>
    %c0_4 = arith.constant 0 : index
    %c0_5 = arith.constant 0 : index
    %6 = vector.load %arg3[%c0_4, %c0_5] : memref<32x16xbf16, #tpu.memory_space<vmem>>, vector<32x16xbf16>
    %cst = arith.constant dense<0.000000e+00> : vector<16x16xf32>
    %7 = tpu.matmul %5, %6, %cst {dimension_numbers = #tpu.dot_dimension_numbers<[1], [0], [0], [1], [0, 0, 1, 1], [], []>} : vector<16x32xbf16>, vector<32x16xbf16>, vector<16x16xf32> -> vector<16x16xf32>
    %8 = vector.extract_strided_slice %7 {offsets = [0, 0], sizes = [16, 6], strides = [1, 1]} : vector<16x16xf32> to vector<16x6xf32>
    %9 = vector.extract_strided_slice %7 {offsets = [0, 6], sizes = [16, 8], strides = [1, 1]} : vector<16x16xf32> to vector<16x8xf32>
    %10 = arith.truncf %9 : vector<16x8xf32> to vector<16x8xbf16>
    %11 = vector.extract_strided_slice %7 {offsets = [0, 14], sizes = [16, 2], strides = [1, 1]} : vector<16x16xf32> to vector<16x2xf32>
    %12 = arith.truncf %11 : vector<16x2xf32> to vector<16x2xbf16>
    %cst_6 = arith.constant dense<0xFF800000> : vector<16xf32>
    %13 = vector.multi_reduction <maximumf>, %8, %cst_6 [1] : vector<16x6xf32> to vector<16xf32>
    %14 = vector.shape_cast %13 : vector<16xf32> to vector<16x1xf32>
    %15 = vector.broadcast %14 : vector<16x1xf32> to vector<16x6xf32>
    %16 = arith.subf %8, %15 : vector<16x6xf32>
    %17 = vector.broadcast %14 : vector<16x1xf32> to vector<16x6xf32>
    %18 = arith.subf %8, %17 : vector<16x6xf32>
    %19 = math.exp %18 : vector<16x6xf32>
    %cst_7 = arith.constant dense<0.000000e+00> : vector<16xf32>
    %20 = vector.multi_reduction <add>, %19, %cst_7 [1] : vector<16x6xf32> to vector<16xf32>
    %21 = vector.shape_cast %20 : vector<16xf32> to vector<16x1xf32>
    %22 = math.log %21 : vector<16x1xf32>
    %23 = vector.broadcast %22 : vector<16x1xf32> to vector<16x6xf32>
    %24 = arith.subf %16, %23 : vector<16x6xf32>
    %c4_i32 = arith.constant 4 : i32
    %25 = vector.broadcast %c4_i32 : i32 to vector<16x1xi32>
    %26 = arith.cmpi slt, %4, %25 : vector<16x1xi32>
    %c20_i32 = arith.constant 20 : i32
    %27 = vector.broadcast %c20_i32 : i32 to vector<16x1xi32>
    %28 = arith.cmpi slt, %4, %27 : vector<16x1xi32>
    %c4_i32_8 = arith.constant 4 : i32
    %c5_i32 = arith.constant 5 : i32
    %29 = vector.broadcast %c4_i32_8 : i32 to vector<16x1xi32>
    %30 = vector.broadcast %c5_i32 : i32 to vector<16x1xi32>
    %31 = arith.select %28, %29, %30 : vector<16x1xi1>, vector<16x1xi32>
    %32 = arith.select %26, %4, %31 : vector<16x1xi1>, vector<16x1xi32>
    %33 = tpu.iota {dimensions = array<i32: 1>} : vector<16x6xi32>
    %34 = vector.broadcast %32 : vector<16x1xi32> to vector<16x6xi32>
    %35 = arith.cmpi eq, %33, %34 : vector<16x6xi32>
    %cst_9 = arith.constant 0.000000e+00 : f32
    %36 = vector.broadcast %cst_9 : f32 to vector<16x6xf32>
    %37 = arith.select %35, %24, %36 : vector<16x6xi1>, vector<16x6xf32>
    %cst_10 = arith.constant dense<0.000000e+00> : vector<16xf32>
    %38 = vector.multi_reduction <add>, %37, %cst_10 [1] : vector<16x6xf32> to vector<16xf32>
    %39 = vector.shape_cast %38 : vector<16xf32> to vector<16x1xf32>
    %c0_11 = arith.constant 0 : index
    %c0_12 = arith.constant 0 : index
    %40 = vector.load %arg4[%c0_11, %c0_12] : memref<8x16xbf16, #tpu.memory_space<vmem>>, vector<8x16xbf16>
    %cst_13 = arith.constant dense<0.000000e+00> : vector<16x16xf32>
    %41 = tpu.matmul %10, %40, %cst_13 {dimension_numbers = #tpu.dot_dimension_numbers<[1], [0], [0], [1], [0, 0, 1, 1], [], []>} : vector<16x8xbf16>, vector<8x16xbf16>, vector<16x16xf32> -> vector<16x16xf32>
    %cst_14 = arith.constant dense<0xFF800000> : vector<16xf32>
    %42 = vector.multi_reduction <maximumf>, %41, %cst_14 [1] : vector<16x16xf32> to vector<16xf32>
    %43 = vector.shape_cast %42 : vector<16xf32> to vector<16x1xf32>
    %44 = vector.broadcast %43 : vector<16x1xf32> to vector<16x16xf32>
    %45 = arith.subf %41, %44 : vector<16x16xf32>
    %46 = vector.broadcast %43 : vector<16x1xf32> to vector<16x16xf32>
    %47 = arith.subf %41, %46 : vector<16x16xf32>
    %48 = math.exp %47 : vector<16x16xf32>
    %cst_15 = arith.constant dense<0.000000e+00> : vector<16xf32>
    %49 = vector.multi_reduction <add>, %48, %cst_15 [1] : vector<16x16xf32> to vector<16xf32>
    %50 = vector.shape_cast %49 : vector<16xf32> to vector<16x1xf32>
    %51 = math.log %50 : vector<16x1xf32>
    %52 = vector.broadcast %51 : vector<16x1xf32> to vector<16x16xf32>
    %53 = arith.subf %45, %52 : vector<16x16xf32>
    %c4_i32_16 = arith.constant 4 : i32
    %54 = vector.broadcast %c4_i32_16 : i32 to vector<16x1xi32>
    %55 = arith.subi %4, %54 : vector<16x1xi32>
    %56 = tpu.iota {dimensions = array<i32: 1>} : vector<16x16xi32>
    %57 = vector.broadcast %55 : vector<16x1xi32> to vector<16x16xi32>
    %58 = arith.cmpi eq, %56, %57 : vector<16x16xi32>
    %cst_17 = arith.constant 0.000000e+00 : f32
    %59 = vector.broadcast %cst_17 : f32 to vector<16x16xf32>
    %60 = arith.select %58, %53, %59 : vector<16x16xi1>, vector<16x16xf32>
    %cst_18 = arith.constant dense<0.000000e+00> : vector<16xf32>
    %61 = vector.multi_reduction <add>, %60, %cst_18 [1] : vector<16x16xf32> to vector<16xf32>
    %62 = vector.shape_cast %61 : vector<16xf32> to vector<16x1xf32>
    %c4_i32_19 = arith.constant 4 : i32
    %63 = vector.broadcast %c4_i32_19 : i32 to vector<16x1xi32>
    %64 = arith.cmpi sge, %4, %63 : vector<16x1xi32>
    %c20_i32_20 = arith.constant 20 : i32
    %65 = vector.broadcast %c20_i32_20 : i32 to vector<16x1xi32>
    %66 = arith.cmpi slt, %4, %65 : vector<16x1xi32>
    %67 = arith.andi %64, %66 : vector<16x1xi1>
    %cst_21 = arith.constant 0.000000e+00 : f32
    %68 = vector.broadcast %cst_21 : f32 to vector<16x1xf32>
    %69 = arith.select %67, %62, %68 : vector<16x1xi1>, vector<16x1xf32>
    %70 = arith.addf %39, %69 : vector<16x1xf32>
    %c0_22 = arith.constant 0 : index
    %c0_23 = arith.constant 0 : index
    %71 = vector.load %arg5[%c0_22, %c0_23] : memref<2x80xbf16, #tpu.memory_space<vmem>>, vector<2x80xbf16>
    %cst_24 = arith.constant dense<0.000000e+00> : vector<16x80xf32>
    %72 = tpu.matmul %12, %71, %cst_24 {dimension_numbers = #tpu.dot_dimension_numbers<[1], [0], [0], [1], [0, 0, 1, 1], [], []>} : vector<16x2xbf16>, vector<2x80xbf16>, vector<16x80xf32> -> vector<16x80xf32>
    %cst_25 = arith.constant dense<0xFF800000> : vector<16xf32>
    %73 = vector.multi_reduction <maximumf>, %72, %cst_25 [1] : vector<16x80xf32> to vector<16xf32>
    %74 = vector.shape_cast %73 : vector<16xf32> to vector<16x1xf32>
    %75 = vector.broadcast %74 : vector<16x1xf32> to vector<16x80xf32>
    %76 = arith.subf %72, %75 : vector<16x80xf32>
    %77 = vector.broadcast %74 : vector<16x1xf32> to vector<16x80xf32>
    %78 = arith.subf %72, %77 : vector<16x80xf32>
    %79 = math.exp %78 : vector<16x80xf32>
    %cst_26 = arith.constant dense<0.000000e+00> : vector<16xf32>
    %80 = vector.multi_reduction <add>, %79, %cst_26 [1] : vector<16x80xf32> to vector<16xf32>
    %81 = vector.shape_cast %80 : vector<16xf32> to vector<16x1xf32>
    %82 = math.log %81 : vector<16x1xf32>
    %83 = vector.broadcast %82 : vector<16x1xf32> to vector<16x80xf32>
    %84 = arith.subf %76, %83 : vector<16x80xf32>
    %c20_i32_27 = arith.constant 20 : i32
    %85 = vector.broadcast %c20_i32_27 : i32 to vector<16x1xi32>
    %86 = arith.subi %4, %85 : vector<16x1xi32>
    %87 = tpu.iota {dimensions = array<i32: 1>} : vector<16x80xi32>
    %88 = vector.broadcast %86 : vector<16x1xi32> to vector<16x80xi32>
    %89 = arith.cmpi eq, %87, %88 : vector<16x80xi32>
    %cst_28 = arith.constant 0.000000e+00 : f32
    %90 = vector.broadcast %cst_28 : f32 to vector<16x80xf32>
    %91 = arith.select %89, %84, %90 : vector<16x80xi1>, vector<16x80xf32>
    %cst_29 = arith.constant dense<0.000000e+00> : vector<16xf32>
    %92 = vector.multi_reduction <add>, %91, %cst_29 [1] : vector<16x80xf32> to vector<16xf32>
    %93 = vector.shape_cast %92 : vector<16xf32> to vector<16x1xf32>
    %c20_i32_30 = arith.constant 20 : i32
    %94 = vector.broadcast %c20_i32_30 : i32 to vector<16x1xi32>
    %95 = arith.cmpi sge, %4, %94 : vector<16x1xi32>
    %cst_31 = arith.constant 0.000000e+00 : f32
    %96 = vector.broadcast %cst_31 : f32 to vector<16x1xf32>
    %97 = arith.select %95, %93, %96 : vector<16x1xi1>, vector<16x1xf32>
    %98 = arith.addf %70, %97 : vector<16x1xf32>
    %c0_32 = arith.constant 0 : index
    %c0_33 = arith.constant 0 : index
    %99 = vector.load %arg6[%c0_32, %c0_33] : memref<16x1xf32, #tpu.memory_space<vmem>>, vector<16x1xf32>
    tpu.vector_store %arg6[%c0_32, %c0_33], %98 {strides = array<i32>} : memref<16x1xf32, #tpu.memory_space<vmem>>, vector<16x1xf32>,
    %c0_34 = arith.constant 0 : index
    %c0_35 = arith.constant 0 : index
    %100 = vector.load %arg7[%c0_34, %c0_35] : memref<1x1xf32, #tpu.memory_space<vmem>>, vector<1x1xf32>
    %cst_36 = arith.constant 0.000000e+00 : f32
    %101 = vector.broadcast %cst_36 : f32 to vector<16x1xf32>
    %102 = arith.subf %101, %98 : vector<16x1xf32>
    %103 = vector.shape_cast %102 : vector<16x1xf32> to vector<1x16x1xf32>
    %cst_37 = arith.constant dense<0.000000e+00> : vector<1xf32>
    %104 = vector.multi_reduction <add>, %103, %cst_37 [1, 2] : vector<1x16x1xf32> to vector<1xf32>
    %105 = vector.shape_cast %104 : vector<1xf32> to vector<1x1x1xf32>
    %106 = vector.extract %105[0, 0, 0] : f32 from vector<1x1x1xf32>
    %107 = vector.broadcast %106 : f32 to vector<1x1xf32>
    %cst_38 = arith.constant 6.250000e-02 : f32
    %108 = vector.broadcast %cst_38 : f32 to vector<1x1xf32>
    %109 = arith.mulf %107, %108 : vector<1x1xf32>
    %110 = arith.addf %100, %109 : vector<1x1xf32>
    %c0_39 = arith.constant 0 : index
    %c0_40 = arith.constant 0 : index
    %111 = vector.load %arg7[%c0_39, %c0_40] : memref<1x1xf32, #tpu.memory_space<vmem>>, vector<1x1xf32>
    tpu.vector_store %arg7[%c0_39, %c0_40], %110 {strides = array<i32>} : memref<1x1xf32, #tpu.memory_space<vmem>>, vector<1x1xf32>,
    return
  }
  func.func @transform_0(%arg0: i32) -> (i32, i32) {
    %c0_i32 = arith.constant 0 : i32
    %c0_i32_0 = arith.constant 0 : i32
    return %arg0, %c0_i32 : i32, i32
  }
  func.func @transform_1(%arg0: i32) -> (i32, i32) {
    %c0_i32 = arith.constant 0 : i32
    %c0_i32_0 = arith.constant 0 : i32
    return %arg0, %c0_i32 : i32, i32
  }
  func.func @transform_2(%arg0: i32) -> (i32, i32) {
    %c0_i32 = arith.constant 0 : i32
    %c0_i32_0 = arith.constant 0 : i32
    %c0_i32_1 = arith.constant 0 : i32
    return %c0_i32, %c0_i32_0 : i32, i32
  }
  func.func @transform_3(%arg0: i32) -> (i32, i32) {
    %c0_i32 = arith.constant 0 : i32
    %c0_i32_0 = arith.constant 0 : i32
    %c0_i32_1 = arith.constant 0 : i32
    return %c0_i32, %c0_i32_0 : i32, i32
  }
  func.func @transform_4(%arg0: i32) -> (i32, i32) {
    %c0_i32 = arith.constant 0 : i32
    %c0_i32_0 = arith.constant 0 : i32
    %c0_i32_1 = arith.constant 0 : i32
    return %c0_i32, %c0_i32_0 : i32, i32
  }
  func.func @transform_5(%arg0: i32) -> (i32, i32) {
    %c0_i32 = arith.constant 0 : i32
    %c0_i32_0 = arith.constant 0 : i32
    return %arg0, %c0_i32 : i32, i32
  }
  func.func @transform_6(%arg0: i32) -> (i32, i32) {
    %c0_i32 = arith.constant 0 : i32
    %c0_i32_0 = arith.constant 0 : i32
    %c0_i32_1 = arith.constant 0 : i32
    return %c0_i32, %c0_i32_0 : i32, i32
  }
}

</mosaic_0001>

<llo_original>
// kernel: gcnn_forward.5
$region0: #{gcnn_forward.5}
  #allocation0 [shape = 'u32[]', space=smem, size = 0x4, offset = 0x4, fixed_abs, tag = 'smem constant byte address 0x4 - core index']
  #allocation1 [shape = 'u32[144,128]{1,0:T(1,128)}', space=vmem, size = 0x12000, scoped, tag = 'internal scratch']
  %s0 = inlined_call_operand.vmem [shape: f32[2,1,32,10], index: 0, kind: input, shape index: {}]
  %s1 = inlined_call_operand.vmem [shape: bf16[32,32], index: 1, kind: input, shape index: {}]
  %s2 = inlined_call_operand.vmem [shape: f32[32,1], index: 2, kind: input, shape index: {}]
  %s3 = inlined_call_operand.vmem [shape: bf16[16,32], index: 3, kind: input, shape index: {}]
  %s4 = inlined_call_operand.vmem [shape: f32[16,1], index: 4, kind: input, shape index: {}]
  %s5 = inlined_call_operand.vmem [shape: bf16[16,48], index: 5, kind: input, shape index: {}]
  %s6 = inlined_call_operand.vmem [shape: f32[16,1], index: 6, kind: input, shape index: {}]
  %s7 = inlined_call_operand.vmem [shape: bf16[64,16], index: 7, kind: input, shape index: {}]
  %s8 = inlined_call_operand.vmem [shape: f32[64,1], index: 8, kind: input, shape index: {}]
  %s9 = inlined_call_operand.vmem [shape: f32[2,32,8], index: 9, kind: output, shape index: {}]
  %s10 = sld [smem:[#allocation0]]
  $region69: #{gcnn_forward.5} parent=0
    _
  %s12 = ssub.s32 1, %s10
  %s13 = scalar_select 0, %s12, %s10
  loop: start=0, step=1, limit=4
  $region2: #{gcnn_forward.5} parent=0 // loop_pre_header
    _
  $region3: #{gcnn_forward.5} parent=0 // loop_header
    %s15 = sphi 0, %s19
    %p16 = scmp.ge.s32.totalorder %s15, 4
    %s22 = sphi 0, %s34
    %s23 = sphi 0, %s30
    %s24 = sphi 0, %s22
    %s25 = sphi 0, %s23
    %s26 = sphi 0, %s24
    %s27 = sphi 0, %s25
    %s39 = sphi 0, %s41
    %s42 = sphi 0, %s39
    %s43 = sphi 0, %s42
    %s59 = sphi 0, %s43
    %s63 = sphi 0, %s63
    %s65 = sphi 0, %s63
    %s66 = sphi 0, %s65
    %s80 = sphi 0, %s66
    %s84 = sphi 0, %s84
    %s86 = sphi 0, %s84
    %s87 = sphi 0, %s86
    %s101 = sphi 0, %s87
    %s105 = sphi 0, %s105
    %s107 = sphi 0, %s105
    %s108 = sphi 0, %s107
    %s122 = sphi 0, %s108
    %s126 = sphi 0, %s126
    %s128 = sphi 0, %s126
    %s129 = sphi 0, %s128
    %s143 = sphi 0, %s129
    %s147 = sphi 0, %s147
    %s149 = sphi 0, %s147
    %s150 = sphi 0, %s149
    %s164 = sphi 0, %s150
    %s168 = sphi 0, %s168
    %s170 = sphi 0, %s168
    %s171 = sphi 0, %s170
    %s185 = sphi 0, %s171
    %s189 = sphi 0, %s189
    %s191 = sphi 0, %s189
    %s192 = sphi 0, %s191
    %s206 = sphi 0, %s192
    %s210 = sphi 0, %s210
    %s212 = sphi 0, %s210
    %s213 = sphi 0, %s212
    %s227 = sphi 0, %s213
    %s235 = sphi 0, %s237
    %s238 = sphi 0, %s235
    %s239 = sphi 0, %s238
    %s255 = sphi 0, %s239
  $region4: #{gcnn_forward.5} parent=0 // loop_header_branch
    %18 = sbr.rel (%p16) target = $region8
  $region5: #{gcnn_forward.5} parent=0 // loop_body
    %s20 = ssub.s32 %s15, 1
    %s21 = ssub.s32 %s15, 2
    %s28 = sadd.s32 1, %s23
    %p29 = scmp.ge.s32.totalorder %s28, 1
    %s30 = scalar_select %p29, 0, %s28
    %s31 = sadd.s32 1, %s22
    %s32 = scalar_select %p29, %s31, %s22
    %p33 = scmp.ge.s32.totalorder %s32, 2
    %s34 = scalar_select %p33, 0, %s32
    %s35 = ssub.s32 %s22, %s34
    %s36 = ssub.s32 %s23, %s30
    %s37 = sor.u32 %s35, %s36
    %p38 = scmp.eq.s32.totalorder %s37, 0
    %s40 = sadd.s32 %s39, 1
    %s41 = scalar_select %p38, %s39, %s40
    %p44 = pneg %p38
    %p45 = scmp.eq.s32.totalorder %s15, 1
    %p46 = por %p44, %p45
    %p47 = scmp.ne.s32.totalorder %s39, %s42
    %p48 = scmp.eq.s32.totalorder %s15, 0
    %p49 = por %p47, %p48
    %p50 = scmp.ne.s32.totalorder %s39, %s42
    %p51 = scmp.eq.s32.totalorder %s20, 1
    %p52 = por %p50, %p51
    %p53 = scmp.ne.s32.totalorder %s42, %s43
    %p54 = scmp.eq.s32.totalorder %s20, 0
    %p55 = por %p53, %p54
    %p56 = scmp.ne.s32.totalorder %s42, %s43
    %p57 = scmp.eq.s32.totalorder %s21, 1
    %p58 = por %p56, %p57
    %p60 = scmp.ne.s32.totalorder %s43, %s59
    %p61 = scmp.eq.s32.totalorder %s21, 0
    %p62 = por %p60, %p61
    %s64 = sadd.s32 %s63, 1
    %p67 = scmp.eq.s32.totalorder %s15, 1
    %p68 = scmp.ne.s32.totalorder %s63, %s65
    %p69 = scmp.eq.s32.totalorder %s15, 0
    %p70 = por %p68, %p69
    %p71 = scmp.ne.s32.totalorder %s63, %s65
    %p72 = scmp.eq.s32.totalorder %s20, 1
    %p73 = por %p71, %p72
    %p74 = scmp.ne.s32.totalorder %s65, %s66
    %p75 = scmp.eq.s32.totalorder %s20, 0
    %p76 = por %p74, %p75
    %p77 = scmp.ne.s32.totalorder %s65, %s66
    %p78 = scmp.eq.s32.totalorder %s21, 1
    %p79 = por %p77, %p78
    %p81 = scmp.ne.s32.totalorder %s66, %s80
    %p82 = scmp.eq.s32.totalorder %s21, 0
    %p83 = por %p81, %p82
    %s85 = sadd.s32 %s84, 1
    %p88 = scmp.eq.s32.totalorder %s15, 1
    %p89 = scmp.ne.s32.totalorder %s84, %s86
    %p90 = scmp.eq.s32.totalorder %s15, 0
    %p91 = por %p89, %p90
    %p92 = scmp.ne.s32.totalorder %s84, %s86
    %p93 = scmp.eq.s32.totalorder %s20, 1
    %p94 = por %p92, %p93
    %p95 = scmp.ne.s32.totalorder %s86, %s87
    %p96 = scmp.eq.s32.totalorder %s20, 0
    %p97 = por %p95, %p96
    %p98 = scmp.ne.s32.totalorder %s86, %s87
    %p99 = scmp.eq.s32.totalorder %s21, 1
    %p100 = por %p98, %p99
    %p102 = scmp.ne.s32.totalorder %s87, %s101
    %p103 = scmp.eq.s32.totalorder %s21, 0
    %p104 = por %p102, %p103
    %s106 = sadd.s32 %s105, 1
    %p109 = scmp.eq.s32.totalorder %s15, 1
    %p110 = scmp.ne.s32.totalorder %s105, %s107
    %p111 = scmp.eq.s32.totalorder %s15, 0
    %p112 = por %p110, %p111
    %p113 = scmp.ne.s32.totalorder %s105, %s107
    %p114 = scmp.eq.s32.totalorder %s20, 1
    %p115 = por %p113, %p114
    %p116 = scmp.ne.s32.totalorder %s107, %s108
    %p117 = scmp.eq.s32.totalorder %s20, 0
    %p118 = por %p116, %p117
    %p119 = scmp.ne.s32.totalorder %s107, %s108
    %p120 = scmp.eq.s32.totalorder %s21, 1
    %p121 = por %p119, %p120
    %p123 = scmp.ne.s32.totalorder %s108, %s122
    %p124 = scmp.eq.s32.totalorder %s21, 0
    %p125 = por %p123, %p124
    %s127 = sadd.s32 %s126, 1
    %p130 = scmp.eq.s32.totalorder %s15, 1
    %p131 = scmp.ne.s32.totalorder %s126, %s128
    %p132 = scmp.eq.s32.totalorder %s15, 0
    %p133 = por %p131, %p132
    %p134 = scmp.ne.s32.totalorder %s126, %s128
    %p135 = scmp.eq.s32.totalorder %s20, 1
    %p136 = por %p134, %p135
    %p137 = scmp.ne.s32.totalorder %s128, %s129
    %p138 = scmp.eq.s32.totalorder %s20, 0
    %p139 = por %p137, %p138
    %p140 = scmp.ne.s32.totalorder %s128, %s129
    %p141 = scmp.eq.s32.totalorder %s21, 1
    %p142 = por %p140, %p141
    %p144 = scmp.ne.s32.totalorder %s129, %s143
    %p145 = scmp.eq.s32.totalorder %s21, 0
    %p146 = por %p144, %p145
    %s148 = sadd.s32 %s147, 1
    %p151 = scmp.eq.s32.totalorder %s15, 1
    %p152 = scmp.ne.s32.totalorder %s147, %s149
    %p153 = scmp.eq.s32.totalorder %s15, 0
    %p154 = por %p152, %p153
    %p155 = scmp.ne.s32.totalorder %s147, %s149
    %p156 = scmp.eq.s32.totalorder %s20, 1
    %p157 = por %p155, %p156
    %p158 = scmp.ne.s32.totalorder %s149, %s150
    %p159 = scmp.eq.s32.totalorder %s20, 0
    %p160 = por %p158, %p159
    %p161 = scmp.ne.s32.totalorder %s149, %s150
    %p162 = scmp.eq.s32.totalorder %s21, 1
    %p163 = por %p161, %p162
    %p165 = scmp.ne.s32.totalorder %s150, %s164
    %p166 = scmp.eq.s32.totalorder %s21, 0
    %p167 = por %p165, %p166
    %s169 = sadd.s32 %s168, 1
    %p172 = scmp.eq.s32.totalorder %s15, 1
    %p173 = scmp.ne.s32.totalorder %s168, %s170
    %p174 = scmp.eq.s32.totalorder %s15, 0
    %p175 = por %p173, %p174
    %p176 = scmp.ne.s32.totalorder %s168, %s170
    %p177 = scmp.eq.s32.totalorder %s20, 1
    %p178 = por %p176, %p177
    %p179 = scmp.ne.s32.totalorder %s170, %s171
    %p180 = scmp.eq.s32.totalorder %s20, 0
    %p181 = por %p179, %p180
    %p182 = scmp.ne.s32.totalorder %s170, %s171
    %p183 = scmp.eq.s32.totalorder %s21, 1
    %p184 = por %p182, %p183
    %p186 = scmp.ne.s32.totalorder %s171, %s185
    %p187 = scmp.eq.s32.totalorder %s21, 0
    %p188 = por %p186, %p187
    %s190 = sadd.s32 %s189, 1
    %p193 = scmp.eq.s32.totalorder %s15, 1
    %p194 = scmp.ne.s32.totalorder %s189, %s191
    %p195 = scmp.eq.s32.totalorder %s15, 0
    %p196 = por %p194, %p195
    %p197 = scmp.ne.s32.totalorder %s189, %s191
    %p198 = scmp.eq.s32.totalorder %s20, 1
    %p199 = por %p197, %p198
    %p200 = scmp.ne.s32.totalorder %s191, %s192
    %p201 = scmp.eq.s32.totalorder %s20, 0
    %p202 = por %p200, %p201
    %p203 = scmp.ne.s32.totalorder %s191, %s192
    %p204 = scmp.eq.s32.totalorder %s21, 1
    %p205 = por %p203, %p204
    %p207 = scmp.ne.s32.totalorder %s192, %s206
    %p208 = scmp.eq.s32.totalorder %s21, 0
    %p209 = por %p207, %p208
    %s211 = sadd.s32 %s210, 1
    %p214 = scmp.eq.s32.totalorder %s15, 1
    %p215 = scmp.ne.s32.totalorder %s210, %s212
    %p216 = scmp.eq.s32.totalorder %s15, 0
    %p217 = por %p215, %p216
    %p218 = scmp.ne.s32.totalorder %s210, %s212
    %p219 = scmp.eq.s32.totalorder %s20, 1
    %p220 = por %p218, %p219
    %p221 = scmp.ne.s32.totalorder %s212, %s213
    %p222 = scmp.eq.s32.totalorder %s20, 0
    %p223 = por %p221, %p222
    %p224 = scmp.ne.s32.totalorder %s212, %s213
    %p225 = scmp.eq.s32.totalorder %s21, 1
    %p226 = por %p224, %p225
    %p228 = scmp.ne.s32.totalorder %s213, %s227
    %p229 = scmp.eq.s32.totalorder %s21, 0
    %p230 = por %p228, %p229
    %s231 = ssub.s32 %s22, %s34
    %s232 = ssub.s32 %s23, %s30
    %s233 = sor.u32 %s231, %s232
    %p234 = scmp.eq.s32.totalorder %s233, 0
    %s236 = sadd.s32 %s235, 1
    %s237 = scalar_select %p234, %s235, %s236
    %p240 = pneg %p234
    %p241 = scmp.eq.s32.totalorder %s15, 1
    %p242 = por %p240, %p241
    %p243 = scmp.ne.s32.totalorder %s235, %s238
    %p244 = scmp.eq.s32.totalorder %s15, 0
    %p245 = por %p243, %p244
    %p246 = scmp.ne.s32.totalorder %s235, %s238
    %p247 = scmp.eq.s32.totalorder %s20, 1
    %p248 = por %p246, %p247
    %p249 = scmp.ne.s32.totalorder %s238, %s239
    %p250 = scmp.eq.s32.totalorder %s20, 0
    %p251 = por %p249, %p250
    %p252 = scmp.ne.s32.totalorder %s238, %s239
    %p253 = scmp.eq.s32.totalorder %s21, 1
    %p254 = por %p252, %p253
    %p256 = scmp.ne.s32.totalorder %s239, %s255
    %p257 = scmp.eq.s32.totalorder %s21, 0
    %p258 = por %p256, %p257
    %p259 = scmp.le.s32.totalorder 1, %s15
    %p260 = scmp.lt.s32.totalorder %s15, 3
    %p261 = pnand %p259, %p260
    %p262 = pneg %p261
    // Predicated region
    $region9: #{gcnn_forward.5} parent=5 // pred_check
      _
    $region10: #{gcnn_forward.5} parent=5 // pred_check_branch
      %264 = sbr.rel (%p261) target = $region12
    $region11: #{gcnn_forward.5} parent=5 // pred_region
      %s265 = ssub.s32 %s15, 1
      // Predicated region
      $region13: #{gcnn_forward.5} parent=11 // pred_check
        %p266 = pneg %p76
      $region14: #{gcnn_forward.5} parent=11 // pred_check_branch
        %268 = sbr.rel (%p266) target = $region16
      $region15: #{gcnn_forward.5} parent=11 // pred_region
        _
      $region16: #{gcnn_forward.5} parent=11 // pred_fallthru
        _
      // Predicated region
      $region17: #{gcnn_forward.5} parent=11 // pred_check
        %p269 = pneg %p97
      $region18: #{gcnn_forward.5} parent=11 // pred_check_branch
        %271 = sbr.rel (%p269) target = $region20
      $region19: #{gcnn_forward.5} parent=11 // pred_region
        _
      $region20: #{gcnn_forward.5} parent=11 // pred_fallthru
        _
      // Predicated region
      $region21: #{gcnn_forward.5} parent=11 // pred_check
        %p272 = pneg %p118
      $region22: #{gcnn_forward.5} parent=11 // pred_check_branch
        %274 = sbr.rel (%p272) target = $region24
      $region23: #{gcnn_forward.5} parent=11 // pred_region
        _
      $region24: #{gcnn_forward.5} parent=11 // pred_fallthru
        _
      // Predicated region
      $region25: #{gcnn_forward.5} parent=11 // pred_check
        %p275 = pneg %p139
      $region26: #{gcnn_forward.5} parent=11 // pred_check_branch
        %277 = sbr.rel (%p275) target = $region28
      $region27: #{gcnn_forward.5} parent=11 // pred_region
        _
      $region28: #{gcnn_forward.5} parent=11 // pred_fallthru
        _
      // Predicated region
      $region29: #{gcnn_forward.5} parent=11 // pred_check
        %p278 = pneg %p160
      $region30: #{gcnn_forward.5} parent=11 // pred_check_branch
        %280 = sbr.rel (%p278) target = $region32
      $region31: #{gcnn_forward.5} parent=11 // pred_region
        _
      $region32: #{gcnn_forward.5} parent=11 // pred_fallthru
        _
      // Predicated region
      $region33: #{gcnn_forward.5} parent=11 // pred_check
        %p281 = pneg %p181
      $region34: #{gcnn_forward.5} parent=11 // pred_check_branch
        %283 = sbr.rel (%p281) target = $region36
      $region35: #{gcnn_forward.5} parent=11 // pred_region
        _
      $region36: #{gcnn_forward.5} parent=11 // pred_fallthru
        _
      // Predicated region
      $region37: #{gcnn_forward.5} parent=11 // pred_check
        %p284 = pneg %p202
      $region38: #{gcnn_forward.5} parent=11 // pred_check_branch
        %286 = sbr.rel (%p284) target = $region40
      $region39: #{gcnn_forward.5} parent=11 // pred_region
        _
      $region40: #{gcnn_forward.5} parent=11 // pred_fallthru
        _
      // Predicated region
      $region41: #{gcnn_forward.5} parent=11 // pred_check
        %p287 = pneg %p223
      $region42: #{gcnn_forward.5} parent=11 // pred_check_branch
        %289 = sbr.rel (%p287) target = $region44
      $region43: #{gcnn_forward.5} parent=11 // pred_region
        _
      $region44: #{gcnn_forward.5} parent=11 // pred_fallthru
        _
    $region12: #{gcnn_forward.5} parent=5 // pred_fallthru
      _
    %p290 = scmp.lt.s32.totalorder %s15, 2
    // Predicated region
    $region45: #{gcnn_forward.5} parent=5 // pred_check
      %p291 = pneg %p290
    $region46: #{gcnn_forward.5} parent=5 // pred_check_branch
      %293 = sbr.rel (%p291) target = $region48
    $region47: #{gcnn_forward.5} parent=5 // pred_region
      // Predicated region
      $region49: #{gcnn_forward.5} parent=47 // pred_check
        %p294 = pneg %p49
      $region50: #{gcnn_forward.5} parent=47 // pred_check_branch
        %296 = sbr.rel (%p294) target = $region52
      $region51: #{gcnn_forward.5} parent=47 // pred_region
        %p297 = scmp.lt.s32.totalorder %s22, 1
        %s298 = scalar_select %p297, %s22, 1
        %p299 = scmp.lt.s32.totalorder %s23, 0
        %s300 = scalar_select %p299, %s23, 0
        %s301 = smul.addr %s300, 4
        %s302 = smul.addr %s298, 4
        %s303 = sadd.s32 %s301, %s302
        %s304 = smul.addr %s303, 8
        %s305 = scalar_lea.vmem %s0, %s304
      $region52: #{gcnn_forward.5} parent=47 // pred_fallthru
        _
    $region48: #{gcnn_forward.5} parent=5 // pred_fallthru
      _
    %p306 = scmp.le.s32.totalorder 1, %s15
    %p307 = scmp.lt.s32.totalorder %s15, 3
    %p308 = pnand %p306, %p307
    %p309 = pneg %p308
    // Predicated region
    $region53: #{gcnn_forward.5} parent=5 // pred_check
      _
    $region54: #{gcnn_forward.5} parent=5 // pred_check_branch
      %311 = sbr.rel (%p308) target = $region56
    $region55: #{gcnn_forward.5} parent=5 // pred_region
      %s312 = ssub.s32 %s15, 1
      %p313 = scmp.lt.s32.totalorder %s24, 1
      %s314 = scalar_select %p313, %s24, 1
      %p315 = scmp.lt.s32.totalorder %s25, 0
      %s316 = scalar_select %p315, %s25, 0
      %s317 = smul.addr %s316, 4
      %s318 = smul.addr %s314, 4
      %s319 = sadd.s32 %s317, %s318
      %s320 = smul.addr %s319, 8
      %s321 = scalar_lea.vmem %s0, %s320
      %p322 = pneg %p55
      %p323 = pneg %p52
      %p324 = pneg %p76
      %p325 = pneg %p73
      %p326 = pneg %p97
      %p327 = pneg %p94
      %p328 = pneg %p118
      %p329 = pneg %p115
      %p330 = pneg %p139
      %p331 = pneg %p136
      %p332 = pneg %p160
      %p333 = pneg %p157
      %p334 = pneg %p181
      %p335 = pneg %p178
      %p336 = pneg %p202
      %p337 = pneg %p199
      %p338 = pneg %p223
      %p339 = pneg %p220
      %p340 = pneg %p251
      %p341 = pneg %p248
      %p342 = scmp.lt.s32.totalorder %s24, 1
      %s343 = scalar_select %p342, %s24, 1
      %p344 = scmp.lt.s32.totalorder %s25, 0
      %s345 = scalar_select %p344, %s25, 0
      %s346 = smul.addr %s343, 4
      %s347 = sadd.s32 %s345, %s346
      %s348 = smul.addr %s347, 8
      %s349 = scalar_lea.vmem %s9, %s348
      %p350 = scmp.lt.s32.totalorder %s24, 1
      %s351 = scalar_select %p350, %s24, 1
      %p352 = scmp.lt.s32.totalorder %s25, 0
      %s353 = scalar_select %p352, %s25, 0
      %s354 = smul.addr %s353, 4
      %s355 = smul.addr %s351, 4
      %s356 = sadd.s32 %s354, %s355
      %s357 = smul.addr %s356, 8
      %s358 = scalar_lea.vmem %s0, %s357
      %p359 = scmp.lt.s32.totalorder %s24, 1
      %s360 = scalar_select %p359, %s24, 1
      %p361 = scmp.lt.s32.totalorder %s25, 0
      %s362 = scalar_select %p361, %s25, 0
      %s363 = smul.addr %s360, 4
      %s364 = sadd.s32 %s362, %s363
      %s365 = smul.addr %s364, 8
      %s366 = scalar_lea.vmem %s9, %s365
      %v368 = vld [vmem:[%s358] sm:$0xff]
      %v369 = vld [vmem:[%s358 + $0x8] sm:$0xff]
      %v370 = vld [vmem:[%s358 + $0x10] sm:$0xff]
      %v371 = vld [vmem:[%s358 + $0x18] sm:$0xff]
      %v372 = vpack.c.bf16 %v369, %v368
      %v373 = vpack.c.bf16 %v371, %v370
      %v374 = vld [vmem:[%s3] sm:$0xf]
      %v375 = vld [vmem:[%s3 + $0x4] sm:$0xf]
      %v376 = vld [vmem:[%s4] sm:$0xff]
      %v377 = vld [vmem:[%s4 + $0x8] sm:$0xff]
      %379 = vset.pattern.permute.xlu0 0
      %380 = vperm.xlu0 %379, %v376
      %v381 = vpop.permute.xlu0 %380
      %384 = vset.pattern.permute.xlu0 0
      %385 = vperm.xlu0 %384, %v377
      %v386 = vpop.permute.xlu0 %385
      %v390 = vunpack.c.l.b16 %v374
      %v391 = vunpack.c.l.b16 %v375
      %v392 = vpack.c.b16 %v391, %v390
      %vm393 = vcmask 261120
      %v395 = vsel %vm393, %v392, 0
      %397 = vmatprep.subr.bf16.mxu0 0
      %398 = vmatpush1.bf16.msra.mxu0 %v372
      %399 = vmatprep.subr.bf16.mxu0 0
      %400 = vmatpush1.bf16.msra.mxu0 %v373
      %401 = vmatprep.subr.bf16.mxu0 0
      %402 = vmatpush1.bf16.msra.mxu0 0
      %403 = vmatprep.subr.bf16.mxu0 0
      %404 = vmatpush1.bf16.msra.mxu0 0
      %405 = vmatprep.subr.bf16.mxu0 0
      %406 = vmatpush1.bf16.msra.mxu0 0
      %407 = vmatprep.subr.bf16.mxu0 0
      %408 = vmatpush1.bf16.msra.mxu0 0
      %409 = vmatprep.subr.bf16.mxu0 0
      %410 = vmatpush1.bf16.msra.mxu0 0
      %411 = vmatprep.subr.bf16.mxu0 0
      %412 = vmatpush1.bf16.msra.mxu0 0
      %413 = vmatprep.subr.bf16.mxu0 0
      %414 = vmatpush1.bf16.msra.mxu0 0
      %415 = vmatprep.subr.bf16.mxu0 0
      %416 = vmatpush1.bf16.msra.mxu0 0
      %417 = vmatprep.subr.bf16.mxu0 0
      %418 = vmatpush1.bf16.msra.mxu0 0
      %419 = vmatprep.subr.bf16.mxu0 0
      %420 = vmatpush1.bf16.msra.mxu0 0
      %421 = vmatprep.subr.bf16.mxu0 0
      %422 = vmatpush1.bf16.msra.mxu0 0
      %423 = vmatprep.subr.bf16.mxu0 0
      %424 = vmatpush1.bf16.msra.mxu0 0
      %425 = vmatprep.subr.bf16.mxu0 0
      %426 = vmatpush1.bf16.msra.mxu0 0
      %427 = vmatprep.subr.bf16.mxu0 0
      %428 = vmatpush1.bf16.msra.mxu0 0
      %429 = vmatprep.mubr.bf16.mxu0 0
      %430 = vmatmul.mubr.bf16.gmra.mrb[0].mxu0 %v395
      %v431 = vpop.f32.mrb[0].mxu0
      %v432 = vadd.f32 %v381, %v431
      %v433 = vpop.f32.mrb[0].mxu0
      %v434 = vpop.f32.mrb[0].mxu0
      %v435 = vadd.f32 %v386, %v434
      %v436 = vpop.f32.mrb[0].mxu0
      %437 = vdwg.mxu0
      %440 = vrot.lane.b32.xlu0 %v432, 127
      %v441 = vpop.permute.xlu0 %440
      %442 = vrot.lane.b32.xlu0 %v435, 127
      %v443 = vpop.permute.xlu0 %442
      %446 = vrot.lane.b32.xlu0 %v432, 126
      %v447 = vpop.permute.xlu0 %446
      %448 = vrot.lane.b32.xlu0 %v435, 126
      %v449 = vpop.permute.xlu0 %448
      %v452 = vpack.c.bf16 %v435, %v432
      %v453 = vpack.c.bf16 %v443, %v441
      %v454 = vpack.c.bf16 %v449, %v447
      %v455 = vld [vmem:[%s5] sm:$0xf]
      %v456 = vld [vmem:[%s5 + $0x4] sm:$0xf]
      %v457 = vld [vmem:[%s6] sm:$0xff]
      %v458 = vld [vmem:[%s6 + $0x8] sm:$0xff]
      %460 = vset.pattern.permute.xlu0 0
      %461 = vperm.xlu0 %460, %v457
      %v462 = vpop.permute.xlu0 %461
      %465 = vset.pattern.permute.xlu0 0
      %466 = vperm.xlu0 %465, %v458
      %v467 = vpop.permute.xlu0 %466
      %v471 = vunpack.c.l.b16 %v455
      %v472 = vunpack.c.l.b16 %v456
      %v473 = vpack.c.b16 %v472, %v471
      %vm474 = vcmask 392192
      %v476 = vsel %vm474, %v473, 0
      %478 = vmatprep.subr.bf16.mxu0 0
      %479 = vmatpush1.bf16.msra.mxu0 %v452
      %480 = vmatprep.subr.bf16.mxu0 0
      %481 = vmatpush1.bf16.msra.mxu0 %v453
      %482 = vmatprep.subr.bf16.mxu0 0
      %483 = vmatpush1.bf16.msra.mxu0 %v454
      %484 = vmatprep.subr.bf16.mxu0 0
      %485 = vmatpush1.bf16.msra.mxu0 0
      %486 = vmatprep.subr.bf16.mxu0 0
      %487 = vmatpush1.bf16.msra.mxu0 0
      %488 = vmatprep.subr.bf16.mxu0 0
      %489 = vmatpush1.bf16.msra.mxu0 0
      %490 = vmatprep.subr.bf16.mxu0 0
      %491 = vmatpush1.bf16.msra.mxu0 0
      %492 = vmatprep.subr.bf16.mxu0 0
      %493 = vmatpush1.bf16.msra.mxu0 0
      %494 = vmatprep.subr.bf16.mxu0 0
      %495 = vmatpush1.bf16.msra.mxu0 0
      %496 = vmatprep.subr.bf16.mxu0 0
      %497 = vmatpush1.bf16.msra.mxu0 0
      %498 = vmatprep.subr.bf16.mxu0 0
      %499 = vmatpush1.bf16.msra.mxu0 0
      %500 = vmatprep.subr.bf16.mxu0 0
      %501 = vmatpush1.bf16.msra.mxu0 0
      %502 = vmatprep.subr.bf16.mxu0 0
      %503 = vmatpush1.bf16.msra.mxu0 0
      %504 = vmatprep.subr.bf16.mxu0 0
      %505 = vmatpush1.bf16.msra.mxu0 0
      %506 = vmatprep.subr.bf16.mxu0 0
      %507 = vmatpush1.bf16.msra.mxu0 0
      %508 = vmatprep.subr.bf16.mxu0 0
      %509 = vmatpush1.bf16.msra.mxu0 0
      %510 = vmatprep.mubr.bf16.mxu0 0
      %511 = vmatmul.mubr.bf16.gmra.mrb[0].mxu0 %v476
      %v512 = vpop.f32.mrb[0].mxu0
      %v513 = vadd.f32 %v462, %v512
      %v514 = vpop.f32.mrb[0].mxu0
      %v515 = vpop.f32.mrb[0].mxu0
      %v516 = vadd.f32 %v467, %v515
      %v517 = vpop.f32.mrb[0].mxu0
      %518 = vdwg.mxu0
      %v519 = vld [vmem:[%s7] sm:$0xf]
      %v520 = vld [vmem:[%s7 + $0x4] sm:$0xf]
      %v521 = vld [vmem:[%s7 + $0x8] sm:$0xf]
      %v522 = vld [vmem:[%s7 + $0xc] sm:$0xf]
      %v523 = vld [vmem:[%s7 + $0x10] sm:$0xf]
      %v524 = vld [vmem:[%s7 + $0x14] sm:$0xf]
      %v525 = vld [vmem:[%s7 + $0x18] sm:$0xf]
      %v526 = vld [vmem:[%s7 + $0x1c] sm:$0xf]
      %v527 = vpack.c.bf16 %v516, %v513
      %v528 = vld [vmem:[%s8] sm:$0xff]
      %v529 = vld [vmem:[%s8 + $0x8] sm:$0xff]
      %v530 = vld [vmem:[%s8 + $0x10] sm:$0xff]
      %v531 = vld [vmem:[%s8 + $0x18] sm:$0xff]
      %v532 = vld [vmem:[%s8 + $0x20] sm:$0xff]
      %v533 = vld [vmem:[%s8 + $0x28] sm:$0xff]
      %v534 = vld [vmem:[%s8 + $0x30] sm:$0xff]
      %v535 = vld [vmem:[%s8 + $0x38] sm:$0xff]
      %537 = vset.pattern.permute.xlu0 0
      %538 = vperm.xlu0 %537, %v528
      %v539 = vpop.permute.xlu0 %538
      %542 = vset.pattern.permute.xlu0 0
      %543 = vperm.xlu0 %542, %v529
      %v544 = vpop.permute.xlu0 %543
      %547 = vset.pattern.permute.xlu0 0
      %548 = vperm.xlu0 %547, %v530
      %v549 = vpop.permute.xlu0 %548
      %552 = vset.pattern.permute.xlu0 0
      %553 = vperm.xlu0 %552, %v531
      %v554 = vpop.permute.xlu0 %553
      %557 = vset.pattern.permute.xlu0 0
      %558 = vperm.xlu0 %557, %v532
      %v559 = vpop.permute.xlu0 %558
      %562 = vset.pattern.permute.xlu0 0
      %563 = vperm.xlu0 %562, %v533
      %v564 = vpop.permute.xlu0 %563
      %567 = vset.pattern.permute.xlu0 0
      %568 = vperm.xlu0 %567, %v534
      %v569 = vpop.permute.xlu0 %568
      %572 = vset.pattern.permute.xlu0 0
      %573 = vperm.xlu0 %572, %v535
      %v574 = vpop.permute.xlu0 %573
      %v584 = vunpack.c.l.b16 %v519
      %v585 = vunpack.c.l.b16 %v520
      %v586 = vunpack.c.l.b16 %v521
      %v587 = vunpack.c.l.b16 %v522
      %v588 = vunpack.c.l.b16 %v523
      %v589 = vunpack.c.l.b16 %v524
      %v590 = vunpack.c.l.b16 %v525
      %v591 = vunpack.c.l.b16 %v526
      %v592 = vpack.c.b16 %v585, %v584
      %v593 = vpack.c.b16 %v587, %v586
      %v594 = vpack.c.b16 %v589, %v588
      %v595 = vpack.c.b16 %v591, %v590
      %vm596 = vcmask 130048
      %v598 = vsel %vm596, %v592, 0
      %v601 = vsel %vm596, %v593, 0
      %v604 = vsel %vm596, %v594, 0
      %v607 = vsel %vm596, %v595, 0
      %609 = vmatprep.subr.bf16.mxu0 0
      %610 = vmatpush1.bf16.msra.mxu0 %v527
      %611 = vmatprep.subr.bf16.mxu0 0
      %612 = vmatpush1.bf16.msra.mxu0 0
      %613 = vmatprep.subr.bf16.mxu0 0
      %614 = vmatpush1.bf16.msra.mxu0 0
      %615 = vmatprep.subr.bf16.mxu0 0
      %616 = vmatpush1.bf16.msra.mxu0 0
      %617 = vmatprep.subr.bf16.mxu0 0
      %618 = vmatpush1.bf16.msra.mxu0 0
      %619 = vmatprep.subr.bf16.mxu0 0
      %620 = vmatpush1.bf16.msra.mxu0 0
      %621 = vmatprep.subr.bf16.mxu0 0
      %622 = vmatpush1.bf16.msra.mxu0 0
      %623 = vmatprep.subr.bf16.mxu0 0
      %624 = vmatpush1.bf16.msra.mxu0 0
      %625 = vmatprep.subr.bf16.mxu0 0
      %626 = vmatpush1.bf16.msra.mxu0 0
      %627 = vmatprep.subr.bf16.mxu0 0
      %628 = vmatpush1.bf16.msra.mxu0 0
      %629 = vmatprep.subr.bf16.mxu0 0
      %630 = vmatpush1.bf16.msra.mxu0 0
      %631 = vmatprep.subr.bf16.mxu0 0
      %632 = vmatpush1.bf16.msra.mxu0 0
      %633 = vmatprep.subr.bf16.mxu0 0
      %634 = vmatpush1.bf16.msra.mxu0 0
      %635 = vmatprep.subr.bf16.mxu0 0
      %636 = vmatpush1.bf16.msra.mxu0 0
      %637 = vmatprep.subr.bf16.mxu0 0
      %638 = vmatpush1.bf16.msra.mxu0 0
      %639 = vmatprep.subr.bf16.mxu0 0
      %640 = vmatpush1.bf16.msra.mxu0 0
      %641 = vmatprep.mubr.bf16.mxu0 0
      %642 = vmatmul.mubr.bf16.gmra.mrb[0].mxu0 %v598
      %v643 = vpop.f32.mrb[0].mxu0
      %v644 = vadd.f32 %v539, %v643
      %v645 = vpop.f32.mrb[0].mxu0
      %v646 = vpop.f32.mrb[0].mxu0
      %v647 = vadd.f32 %v544, %v646
      %v648 = vpop.f32.mrb[0].mxu0
      %649 = vmatprep.mubr.bf16.mxu0 0
      %650 = vmatmul.mubr.bf16.gmra.mrb[0].mxu0 %v601
      %v651 = vpop.f32.mrb[0].mxu0
      %v652 = vadd.f32 %v549, %v651
      %v653 = vpop.f32.mrb[0].mxu0
      %v654 = vpop.f32.mrb[0].mxu0
      %v655 = vadd.f32 %v554, %v654
      %v656 = vpop.f32.mrb[0].mxu0
      %657 = vmatprep.mubr.bf16.mxu0 0
      %658 = vmatmul.mubr.bf16.gmra.mrb[0].mxu0 %v604
      %v659 = vpop.f32.mrb[0].mxu0
      %v660 = vadd.f32 %v559, %v659
      %v661 = vpop.f32.mrb[0].mxu0
      %v662 = vpop.f32.mrb[0].mxu0
      %v663 = vadd.f32 %v564, %v662
      %v664 = vpop.f32.mrb[0].mxu0
      %665 = vmatprep.mubr.bf16.mxu0 0
      %666 = vmatmul.mubr.bf16.gmra.mrb[0].mxu0 %v607
      %v667 = vpop.f32.mrb[0].mxu0
      %v668 = vadd.f32 %v569, %v667
      %v669 = vpop.f32.mrb[0].mxu0
      %v670 = vpop.f32.mrb[0].mxu0
      %v671 = vadd.f32 %v574, %v670
      %v672 = vpop.f32.mrb[0].mxu0
      %673 = vdwg.mxu0
      %v674 = vxor.u32 %v660, 2147483648
      %v675 = vxor.u32 %v663, 2147483648
      %v676 = vxor.u32 %v668, 2147483648
      %v677 = vxor.u32 %v671, 2147483648
      %v678 = vmul.f32 %v674, 1.442695
      %v679 = vpow.pop %v678
      %v680 = vmul.f32 %v675, 1.442695
      %v681 = vpow.pop %v680
      %v682 = vmul.f32 %v676, 1.442695
      %v683 = vpow.pop %v682
      %v684 = vmul.f32 %v677, 1.442695
      %v685 = vpow.pop %v684
      %v686 = vadd.f32 %v679, 1.0
      %v687 = vadd.f32 %v681, 1.0
      %v688 = vadd.f32 %v683, 1.0
      %v689 = vadd.f32 %v685, 1.0
      %v690 = vrcp.pop %v686
      %v691 = vmul.f32 1.0, %v690
      %v692 = vrcp.pop %v687
      %v693 = vmul.f32 1.0, %v692
      %v694 = vrcp.pop %v688
      %v695 = vmul.f32 1.0, %v694
      %v696 = vrcp.pop %v689
      %v697 = vmul.f32 1.0, %v696
      %v698 = vmul.f32 %v644, %v691
      %v699 = vmul.f32 %v647, %v693
      %v700 = vmul.f32 %v652, %v695
      %v701 = vmul.f32 %v655, %v697
      %706 = vrot.lane.b32.xlu0 %v368, 126
      %v707 = vpop.permute.xlu0 %706
      %708 = vrot.lane.b32.xlu0 %v369, 126
      %v709 = vpop.permute.xlu0 %708
      %710 = vrot.lane.b32.xlu0 %v370, 126
      %v711 = vpop.permute.xlu0 %710
      %712 = vrot.lane.b32.xlu0 %v371, 126
      %v713 = vpop.permute.xlu0 %712
      %v718 = vadd.f32 %v698, %v707
      %v719 = vadd.f32 %v699, %v709
      %v720 = vadd.f32 %v700, %v711
      %v721 = vadd.f32 %v701, %v713
      %vm722 = vcmask 64512
      %723 = vst.msk [vmem:[%s366] sm:$0xff] %vm722, %v718
      %724 = vst.msk [vmem:[%s366 + $0x8] sm:$0xff] %vm722, %v719
      %725 = vst.msk [vmem:[%s366 + $0x10] sm:$0xff] %vm722, %v720
      %726 = vst.msk [vmem:[%s366 + $0x18] sm:$0xff] %vm722, %v721
      %p727 = scmp.lt.s32.totalorder %s24, 1
      %s728 = scalar_select %p727, %s24, 1
      %p729 = scmp.lt.s32.totalorder %s25, 0
      %s730 = scalar_select %p729, %s25, 0
      %s731 = smul.addr %s728, 4
      %s732 = sadd.s32 %s730, %s731
      %s733 = smul.addr %s732, 8
      %s734 = scalar_lea.vmem %s9, %s733
      // Predicated region
      $region57: #{gcnn_forward.5} parent=55 // pred_check
        %p735 = pneg %p248
      $region58: #{gcnn_forward.5} parent=55 // pred_check_branch
        %737 = sbr.rel (%p735) target = $region60
      $region59: #{gcnn_forward.5} parent=55 // pred_region
        _
      $region60: #{gcnn_forward.5} parent=55 // pred_fallthru
        _
    $region56: #{gcnn_forward.5} parent=5 // pred_fallthru
      _
    %p738 = scmp.le.s32.totalorder 2, %s15
    // Predicated region
    $region61: #{gcnn_forward.5} parent=5 // pred_check
      %p739 = pneg %p738
    $region62: #{gcnn_forward.5} parent=5 // pred_check_branch
      %741 = sbr.rel (%p739) target = $region64
    $region63: #{gcnn_forward.5} parent=5 // pred_region
      %s742 = ssub.s32 %s15, 2
      // Predicated region
      $region65: #{gcnn_forward.5} parent=63 // pred_check
        %p743 = pneg %p254
      $region66: #{gcnn_forward.5} parent=63 // pred_check_branch
        %745 = sbr.rel (%p743) target = $region68
      $region67: #{gcnn_forward.5} parent=63 // pred_region
        %p746 = scmp.lt.s32.totalorder %s26, 1
        %s747 = scalar_select %p746, %s26, 1
        %p748 = scmp.lt.s32.totalorder %s27, 0
        %s749 = scalar_select %p748, %s27, 0
        %s750 = smul.addr %s747, 4
        %s751 = sadd.s32 %s749, %s750
        %s752 = smul.addr %s751, 8
        %s753 = scalar_lea.vmem %s9, %s752
      $region68: #{gcnn_forward.5} parent=63 // pred_fallthru
        _
    $region64: #{gcnn_forward.5} parent=5 // pred_fallthru
      _
  $region6: #{gcnn_forward.5} parent=0 // loop_footer
    %s19 = sadd.s32 1, %s15
  $region7: #{gcnn_forward.5} parent=0 // loop_footer_branch
    %14 = sbr.rel target = $region3
  $region8: #{gcnn_forward.5} parent=0 // loop_exit
    _

// kernel: gcnn_forward.7
$region0: #{gcnn_forward.7}
  #allocation0 [shape = 'u32[]', space=smem, size = 0x4, offset = 0x4, fixed_abs, tag = 'smem constant byte address 0x4 - core index']
  #allocation1 [shape = 'u32[144,128]{1,0:T(1,128)}', space=vmem, size = 0x12000, scoped, tag = 'internal scratch']
  %s0 = inlined_call_operand.vmem [shape: f32[16,32], index: 0, kind: input, shape index: {}]
  %s1 = inlined_call_operand.vmem [shape: s32[16,1], index: 1, kind: input, shape index: {}]
  %s2 = inlined_call_operand.vmem [shape: bf16[32,16], index: 2, kind: input, shape index: {}]
  %s3 = inlined_call_operand.vmem [shape: bf16[8,16], index: 3, kind: input, shape index: {}]
  %s4 = inlined_call_operand.vmem [shape: bf16[2,80], index: 4, kind: input, shape index: {}]
  %s5 = inlined_call_operand.vmem [shape: f32[16,1], index: 5, kind: output, shape index: {0}]
  %s6 = inlined_call_operand.hbm [shape: f32[1,1], index: 6, kind: output, shape index: {1}]
  %7 = xla_tuple %s5, %s6
  %s8 = sld [smem:[#allocation0]]
  $region42: #{gcnn_forward.7} parent=0
    _
  %s10 = ssub.s32 1, %s8
  %s11 = scalar_select 0, %s10, %s8
  $region1: #{gcnn_forward.7} parent=0
    #allocation2 [shape = 'u8[512]{0}', space=vmem, size = 0x400, scoped, tag = 'output window, operand 1, single buffered']
    #allocation3 [shape = 's32[1]{0}', space=sflag, size = 0x4, scoped, tag = 'scoped memory for gcnn_forward.7']
    %12 = vsyncpa [#allocation3], 0
    // Predicated region
    $region2: #{gcnn_forward.7} parent=1 // pred_check
      _
    $region3: #{gcnn_forward.7} parent=1 // pred_check_branch
      %14 = sbr.rel (0) target = $region5
    $region4: #{gcnn_forward.7} parent=1 // pred_region
      _
    $region5: #{gcnn_forward.7} parent=1 // pred_fallthru
      _
    // Predicated region
    $region6: #{gcnn_forward.7} parent=1 // pred_check
      _
    $region7: #{gcnn_forward.7} parent=1 // pred_check_branch
      %16 = sbr.rel (0) target = $region9
    $region8: #{gcnn_forward.7} parent=1 // pred_region
      _
    $region9: #{gcnn_forward.7} parent=1 // pred_fallthru
      _
    // Predicated region
    $region10: #{gcnn_forward.7} parent=1 // pred_check
      _
    $region11: #{gcnn_forward.7} parent=1 // pred_check_branch
      %18 = sbr.rel (0) target = $region13
    $region12: #{gcnn_forward.7} parent=1 // pred_region
      _
    $region13: #{gcnn_forward.7} parent=1 // pred_fallthru
      _
    // Predicated region
    $region14: #{gcnn_forward.7} parent=1 // pred_check
      _
    $region15: #{gcnn_forward.7} parent=1 // pred_check_branch
      %20 = sbr.rel (0) target = $region17
    $region16: #{gcnn_forward.7} parent=1 // pred_region
      _
    $region17: #{gcnn_forward.7} parent=1 // pred_fallthru
      _
    // Predicated region
    $region18: #{gcnn_forward.7} parent=1 // pred_check
      _
    $region19: #{gcnn_forward.7} parent=1 // pred_check_branch
      %22 = sbr.rel (0) target = $region21
    $region20: #{gcnn_forward.7} parent=1 // pred_region
      _
    $region21: #{gcnn_forward.7} parent=1 // pred_fallthru
      _
    %p24 = scmp.eq.s32.totalorder 0, 0
    // Predicated region
    $region22: #{gcnn_forward.7} parent=1 // pred_check
      %p25 = pneg %p24
    $region23: #{gcnn_forward.7} parent=1 // pred_check_branch
      %27 = sbr.rel (%p25) target = $region25
    $region24: #{gcnn_forward.7} parent=1 // pred_region
      %vm28 = vcmask 0
      %29 = vst.msk [vmem:[#allocation2] sm:$0x1] %vm28, 0.0
    $region25: #{gcnn_forward.7} parent=1 // pred_fallthru
      _
    %v30 = vld [vmem:[%s0] sm:$0xff]
    %v31 = vld [vmem:[%s0 + $0x8] sm:$0xff]
    %v32 = vld [vmem:[%s1] sm:$0xff]
    %v33 = vld [vmem:[%s1 + $0x8] sm:$0xff]
    %v34 = vpack.c.bf16 %v31, %v30
    %v35 = vld [vmem:[%s2] sm:$0xf]
    %v36 = vld [vmem:[%s2 + $0x4] sm:$0xf]
    %v37 = vld [vmem:[%s2 + $0x8] sm:$0xf]
    %v38 = vld [vmem:[%s2 + $0xc] sm:$0xf]
    %v43 = vunpack.c.l.b16 %v35
    %v44 = vunpack.c.l.b16 %v36
    %v45 = vunpack.c.l.b16 %v37
    %v46 = vunpack.c.l.b16 %v38
    %v47 = vpack.c.b16 %v44, %v43
    %v48 = vpack.c.b16 %v46, %v45
    %vm51 = vcmask 261120
    %v53 = vsel %vm51, %v34, 0
    %55 = vmatprep.subr.bf16.mxu0 0
    %56 = vmatpush1.bf16.msra.mxu0 %v47
    %57 = vmatprep.subr.bf16.mxu0 0
    %58 = vmatpush1.bf16.msra.mxu0 %v48
    %59 = vmatprep.subr.bf16.mxu0 0
    %60 = vmatpush1.bf16.msra.mxu0 0
    %61 = vmatprep.subr.bf16.mxu0 0
    %62 = vmatpush1.bf16.msra.mxu0 0
    %63 = vmatprep.subr.bf16.mxu0 0
    %64 = vmatpush1.bf16.msra.mxu0 0
    %65 = vmatprep.subr.bf16.mxu0 0
    %66 = vmatpush1.bf16.msra.mxu0 0
    %67 = vmatprep.subr.bf16.mxu0 0
    %68 = vmatpush1.bf16.msra.mxu0 0
    %69 = vmatprep.subr.bf16.mxu0 0
    %70 = vmatpush1.bf16.msra.mxu0 0
    %71 = vmatprep.subr.bf16.mxu0 0
    %72 = vmatpush1.bf16.msra.mxu0 0
    %73 = vmatprep.subr.bf16.mxu0 0
    %74 = vmatpush1.bf16.msra.mxu0 0
    %75 = vmatprep.subr.bf16.mxu0 0
    %76 = vmatpush1.bf16.msra.mxu0 0
    %77 = vmatprep.subr.bf16.mxu0 0
    %78 = vmatpush1.bf16.msra.mxu0 0
    %79 = vmatprep.subr.bf16.mxu0 0
    %80 = vmatpush1.bf16.msra.mxu0 0
    %81 = vmatprep.subr.bf16.mxu0 0
    %82 = vmatpush1.bf16.msra.mxu0 0
    %83 = vmatprep.subr.bf16.mxu0 0
    %84 = vmatpush1.bf16.msra.mxu0 0
    %85 = vmatprep.subr.bf16.mxu0 0
    %86 = vmatpush1.bf16.msra.mxu0 0
    %87 = vmatprep.mubr.bf16.mxu0 0
    %88 = vmatmul.mubr.bf16.gmra.mrb[0].mxu0 %v53
    %v89 = vpop.f32.mrb[0].mxu0
    %v90 = vadd.f32 0.0, %v89
    %v91 = vpop.f32.mrb[0].mxu0
    %v92 = vpop.f32.mrb[0].mxu0
    %v93 = vadd.f32 0.0, %v92
    %v94 = vpop.f32.mrb[0].mxu0
    %95 = vdwg.mxu0
    %v96 = vpack.c.bf16 %v93, %v90
    %vm97 = vcmask 48128
    %v98 = vsel %vm97, %v90, -inf
    %99 = vmax.xlane.f32.xlu0 %v98
    %v100 = vpop.xlane.xlu0 %99
    %v101 = vsel %vm97, %v93, -inf
    %102 = vmax.xlane.f32.xlu0 %v101
    %v103 = vpop.xlane.xlu0 %102
    %v104 = vsub.f32 %v90, %v100
    %v105 = vsub.f32 %v93, %v103
    %v106 = vmul.f32 %v104, 1.442695
    %v107 = vpow.pop %v106
    %v108 = vmul.f32 %v105, 1.442695
    %v109 = vpow.pop %v108
    %v110 = vsel %vm97, %v107, 0.0
    %111 = vadd.xlane.f32.xlu0 %v110
    %v112 = vpop.xlane.xlu0 %111
    %v113 = vsel %vm97, %v109, 0.0
    %114 = vadd.xlane.f32.xlu0 %v113
    %v115 = vpop.xlane.xlu0 %114
    %v116 = vlog2.pop %v112
    %v117 = vmul.f32 %v116, 0.6931472
    %v118 = vlog2.pop %v115
    %v119 = vmul.f32 %v118, 0.6931472
    %v120 = vsub.f32 %v104, %v117
    %v121 = vsub.f32 %v105, %v119
    %vm122 = vcmp.lt.s32.totalorder %v32, 4
    %vm123 = vcmp.lt.s32.totalorder %v33, 4
    %vm124 = vcmp.lt.s32.totalorder %v32, 20
    %vm125 = vcmp.lt.s32.totalorder %v33, 20
    %v126 = vsel %vm124, 4, 5
    %v127 = vsel %vm125, 4, 5
    %v128 = vsel %vm122, %v32, %v126
    %v129 = vsel %vm123, %v33, %v127
    %v130 = vlaneseq
    %v131 = vand.u32 %v130, 127
    %132 = vset.pattern.permute.xlu0 0
    %133 = vperm.xlu0 %132, %v128
    %v134 = vpop.permute.xlu0 %133
    %135 = vset.pattern.permute.xlu0 0
    %136 = vperm.xlu0 %135, %v129
    %v137 = vpop.permute.xlu0 %136
    %vm138 = vcmp.eq.s32.totalorder %v131, %v134
    %vm139 = vcmp.eq.s32.totalorder %v131, %v137
    %v140 = vsel %vm138, %v120, 0.0
    %v141 = vsel %vm139, %v121, 0.0
    %v142 = vsel %vm97, %v140, 0.0
    %143 = vadd.xlane.f32.xlu0 %v142
    %v144 = vpop.xlane.xlu0 %143
    %v145 = vsel %vm97, %v141, 0.0
    %146 = vadd.xlane.f32.xlu0 %v145
    %v147 = vpop.xlane.xlu0 %146
    %v148 = vld [vmem:[%s3] sm:$0xf]
    %150 = vrot.lane.b32.xlu0 %v96, 122
    %v151 = vpop.permute.xlu0 %150
    %vm152 = vcmask 64512
    %v154 = vsel %vm152, %v151, 0
    %vm156 = vcmask 1043456
    %v158 = vsel %vm156, %v148, 0
    %160 = vmatprep.subr.bf16.mxu0 0
    %161 = vmatpush1.bf16.msra.mxu0 %v158
    %162 = vmatprep.subr.bf16.mxu0 0
    %163 = vmatpush1.bf16.msra.mxu0 0
    %164 = vmatprep.subr.bf16.mxu0 0
    %165 = vmatpush1.bf16.msra.mxu0 0
    %166 = vmatprep.subr.bf16.mxu0 0
    %167 = vmatpush1.bf16.msra.mxu0 0
    %168 = vmatprep.subr.bf16.mxu0 0
    %169 = vmatpush1.bf16.msra.mxu0 0
    %170 = vmatprep.subr.bf16.mxu0 0
    %171 = vmatpush1.bf16.msra.mxu0 0
    %172 = vmatprep.subr.bf16.mxu0 0
    %173 = vmatpush1.bf16.msra.mxu0 0
    %174 = vmatprep.subr.bf16.mxu0 0
    %175 = vmatpush1.bf16.msra.mxu0 0
    %176 = vmatprep.subr.bf16.mxu0 0
    %177 = vmatpush1.bf16.msra.mxu0 0
    %178 = vmatprep.subr.bf16.mxu0 0
    %179 = vmatpush1.bf16.msra.mxu0 0
    %180 = vmatprep.subr.bf16.mxu0 0
    %181 = vmatpush1.bf16.msra.mxu0 0
    %182 = vmatprep.subr.bf16.mxu0 0
    %183 = vmatpush1.bf16.msra.mxu0 0
    %184 = vmatprep.subr.bf16.mxu0 0
    %185 = vmatpush1.bf16.msra.mxu0 0
    %186 = vmatprep.subr.bf16.mxu0 0
    %187 = vmatpush1.bf16.msra.mxu0 0
    %188 = vmatprep.subr.bf16.mxu0 0
    %189 = vmatpush1.bf16.msra.mxu0 0
    %190 = vmatprep.subr.bf16.mxu0 0
    %191 = vmatpush1.bf16.msra.mxu0 0
    %192 = vmatprep.mubr.bf16.mxu0 0
    %193 = vmatmul.mubr.bf16.gmra.mrb[0].mxu0 %v154
    %v194 = vpop.f32.mrb[0].mxu0
    %v195 = vadd.f32 0.0, %v194
    %v196 = vpop.f32.mrb[0].mxu0
    %v197 = vpop.f32.mrb[0].mxu0
    %v198 = vadd.f32 0.0, %v197
    %v199 = vpop.f32.mrb[0].mxu0
    %200 = vdwg.mxu0
    %vm201 = vcmask 130048
    %v202 = vsel %vm201, %v195, -inf
    %203 = vmax.xlane.f32.xlu0 %v202
    %v204 = vpop.xlane.xlu0 %203
    %v205 = vsel %vm201, %v198, -inf
    %206 = vmax.xlane.f32.xlu0 %v205
    %v207 = vpop.xlane.xlu0 %206
    %v208 = vsub.f32 %v195, %v204
    %v209 = vsub.f32 %v198, %v207
    %v210 = vmul.f32 %v208, 1.442695
    %v211 = vpow.pop %v210
    %v212 = vmul.f32 %v209, 1.442695
    %v213 = vpow.pop %v212
    %v214 = vsel %vm201, %v211, 0.0
    %215 = vadd.xlane.f32.xlu0 %v214
    %v216 = vpop.xlane.xlu0 %215
    %v217 = vsel %vm201, %v213, 0.0
    %218 = vadd.xlane.f32.xlu0 %v217
    %v219 = vpop.xlane.xlu0 %218
    %v220 = vlog2.pop %v216
    %v221 = vmul.f32 %v220, 0.6931472
    %v222 = vlog2.pop %v219
    %v223 = vmul.f32 %v222, 0.6931472
    %v224 = vsub.f32 %v208, %v221
    %v225 = vsub.f32 %v209, %v223
    %v226 = vsub.s32 %v32, 4
    %v227 = vsub.s32 %v33, 4
    %228 = vset.pattern.permute.xlu0 0
    %229 = vperm.xlu0 %228, %v226
    %v230 = vpop.permute.xlu0 %229
    %231 = vset.pattern.permute.xlu0 0
    %232 = vperm.xlu0 %231, %v227
    %v233 = vpop.permute.xlu0 %232
    %vm234 = vcmp.eq.s32.totalorder %v131, %v230
    %vm235 = vcmp.eq.s32.totalorder %v131, %v233
    %v236 = vsel %vm234, %v224, 0.0
    %v237 = vsel %vm235, %v225, 0.0
    %v238 = vsel %vm201, %v236, 0.0
    %239 = vadd.xlane.f32.xlu0 %v238
    %v240 = vpop.xlane.xlu0 %239
    %v241 = vsel %vm201, %v237, 0.0
    %242 = vadd.xlane.f32.xlu0 %v241
    %v243 = vpop.xlane.xlu0 %242
    %vm244 = vcmp.ge.s32.totalorder %v32, 4
    %vm245 = vcmp.ge.s32.totalorder %v33, 4
    %vm246 = vmand %vm244, %vm124
    %vm247 = vmand %vm245, %vm125
    %v248 = vsel %vm246, %v240, 0.0
    %v249 = vsel %vm247, %v243, 0.0
    %v250 = vadd.f32 %v144, %v248
    %v251 = vadd.f32 %v147, %v249
    %v252 = vld [vmem:[%s4] sm:$0x1]
    %253 = vrot.lane.b32.xlu0 %v96, 114
    %v254 = vpop.permute.xlu0 %253
    %vm255 = vcmask 15360
    %v257 = vsel %vm255, %v254, 0
    %vm259 = vcmask 1040384
    %v261 = vsel %vm259, %v252, 0
    %263 = vmatprep.subr.bf16.mxu0 0
    %264 = vmatpush1.bf16.msra.mxu0 %v261
    %265 = vmatprep.subr.bf16.mxu0 0
    %266 = vmatpush1.bf16.msra.mxu0 0
    %267 = vmatprep.subr.bf16.mxu0 0
    %268 = vmatpush1.bf16.msra.mxu0 0
    %269 = vmatprep.subr.bf16.mxu0 0
    %270 = vmatpush1.bf16.msra.mxu0 0
    %271 = vmatprep.subr.bf16.mxu0 0
    %272 = vmatpush1.bf16.msra.mxu0 0
    %273 = vmatprep.subr.bf16.mxu0 0
    %274 = vmatpush1.bf16.msra.mxu0 0
    %275 = vmatprep.subr.bf16.mxu0 0
    %276 = vmatpush1.bf16.msra.mxu0 0
    %277 = vmatprep.subr.bf16.mxu0 0
    %278 = vmatpush1.bf16.msra.mxu0 0
    %279 = vmatprep.subr.bf16.mxu0 0
    %280 = vmatpush1.bf16.msra.mxu0 0
    %281 = vmatprep.subr.bf16.mxu0 0
    %282 = vmatpush1.bf16.msra.mxu0 0
    %283 = vmatprep.subr.bf16.mxu0 0
    %284 = vmatpush1.bf16.msra.mxu0 0
    %285 = vmatprep.subr.bf16.mxu0 0
    %286 = vmatpush1.bf16.msra.mxu0 0
    %287 = vmatprep.subr.bf16.mxu0 0
    %288 = vmatpush1.bf16.msra.mxu0 0
    %289 = vmatprep.subr.bf16.mxu0 0
    %290 = vmatpush1.bf16.msra.mxu0 0
    %291 = vmatprep.subr.bf16.mxu0 0
    %292 = vmatpush1.bf16.msra.mxu0 0
    %293 = vmatprep.subr.bf16.mxu0 0
    %294 = vmatpush1.bf16.msra.mxu0 0
    %295 = vmatprep.mubr.bf16.mxu0 0
    %296 = vmatmul.mubr.bf16.gmra.mrb[0].mxu0 %v257
    %v297 = vpop.f32.mrb[0].mxu0
    %v298 = vadd.f32 0.0, %v297
    %v299 = vpop.f32.mrb[0].mxu0
    %v300 = vpop.f32.mrb[0].mxu0
    %v301 = vadd.f32 0.0, %v300
    %v302 = vpop.f32.mrb[0].mxu0
    %303 = vdwg.mxu0
    %vm304 = vcmask 654336
    %v305 = vsel %vm304, %v298, -inf
    %306 = vmax.xlane.f32.xlu0 %v305
    %v307 = vpop.xlane.xlu0 %306
    %v308 = vsel %vm304, %v301, -inf
    %309 = vmax.xlane.f32.xlu0 %v308
    %v310 = vpop.xlane.xlu0 %309
    %v311 = vsub.f32 %v298, %v307
    %v312 = vsub.f32 %v301, %v310
    %v313 = vmul.f32 %v311, 1.442695
    %v314 = vpow.pop %v313
    %v315 = vmul.f32 %v312, 1.442695
    %v316 = vpow.pop %v315
    %v317 = vsel %vm304, %v314, 0.0
    %318 = vadd.xlane.f32.xlu0 %v317
    %v319 = vpop.xlane.xlu0 %318
    %v320 = vsel %vm304, %v316, 0.0
    %321 = vadd.xlane.f32.xlu0 %v320
    %v322 = vpop.xlane.xlu0 %321
    %v323 = vlog2.pop %v319
    %v324 = vmul.f32 %v323, 0.6931472
    %v325 = vlog2.pop %v322
    %v326 = vmul.f32 %v325, 0.6931472
    %v327 = vsub.f32 %v311, %v324
    %v328 = vsub.f32 %v312, %v326
    %v329 = vsub.s32 %v32, 20
    %v330 = vsub.s32 %v33, 20
    %331 = vset.pattern.permute.xlu0 0
    %332 = vperm.xlu0 %331, %v329
    %v333 = vpop.permute.xlu0 %332
    %334 = vset.pattern.permute.xlu0 0
    %335 = vperm.xlu0 %334, %v330
    %v336 = vpop.permute.xlu0 %335
    %vm337 = vcmp.eq.s32.totalorder %v131, %v333
    %vm338 = vcmp.eq.s32.totalorder %v131, %v336
    %v339 = vsel %vm337, %v327, 0.0
    %v340 = vsel %vm338, %v328, 0.0
    %v341 = vsel %vm304, %v339, 0.0
    %342 = vadd.xlane.f32.xlu0 %v341
    %v343 = vpop.xlane.xlu0 %342
    %v344 = vsel %vm304, %v340, 0.0
    %345 = vadd.xlane.f32.xlu0 %v344
    %v346 = vpop.xlane.xlu0 %345
    %vm347 = vcmp.ge.s32.totalorder %v32, 20
    %vm348 = vcmp.ge.s32.totalorder %v33, 20
    %v349 = vsel %vm347, %v343, 0.0
    %v350 = vsel %vm348, %v346, 0.0
    %v351 = vadd.f32 %v250, %v349
    %v352 = vadd.f32 %v251, %v350
    %vm353 = vcmask 7168
    %354 = vst.msk [vmem:[%s5] sm:$0xff] %vm353, %v351
    %355 = vst.msk [vmem:[%s5 + $0x8] sm:$0xff] %vm353, %v352
    %v356 = vld [vmem:[#allocation2] sm:$0x1]
    %v357 = vsub.f32 0.0, %v351
    %v358 = vsub.f32 0.0, %v352
    %v359 = vsel %vm353, %v357, 0.0
    %v360 = vsel %vm353, %v358, 0.0
    %v361 = vadd.f32 %v359, %v360
    %362 = vadd.xlane.f32.xlu0 %v361
    %v363 = vpop.xlane.xlu0 %362
    %v364 = vrot.slane %v363, 4
    %v365 = vadd.f32 %v363, %v364
    %v366 = vrot.slane %v365, 2
    %v367 = vadd.f32 %v365, %v366
    %v368 = vrot.slane %v367, 1
    %v369 = vadd.f32 %v367, %v368
    %s370 = vtos %v369
    %v371 = vstv %s370
    %v372 = vmul.f32 %v371, 0.0625
    %v373 = vadd.f32 %v356, %v372
    %vm374 = vcmask 0
    %375 = vst.msk [vmem:[#allocation2] sm:$0x1] %vm374, %v373
    // Predicated region
    $region26: #{gcnn_forward.7} parent=1 // pred_check
      _
    $region27: #{gcnn_forward.7} parent=1 // pred_check_branch
      %377 = sbr.rel (0) target = $region29
    $region28: #{gcnn_forward.7} parent=1 // pred_region
      _
    $region29: #{gcnn_forward.7} parent=1 // pred_fallthru
      _
    // Predicated region
    $region30: #{gcnn_forward.7} parent=1 // pred_check
      _
    $region31: #{gcnn_forward.7} parent=1 // pred_check_branch
      %379 = sbr.rel (0) target = $region33
    $region32: #{gcnn_forward.7} parent=1 // pred_region
      %s381 = ssub.s32 16, 16
      %382 = vsyncadd [#allocation3], %s381
      %s384 = sshll.u32 [#allocation2], 4
      %s385 = int_to_ptr.vmem [resolvable:$true] %s384
      %387 = dma.vmem_to_hbm [thread:$0]  %s385, 16, %s6, [#allocation3]
    $region33: #{gcnn_forward.7} parent=1 // pred_fallthru
      _
    // Predicated region
    $region34: #{gcnn_forward.7} parent=1 // pred_check
      _
    $region35: #{gcnn_forward.7} parent=1 // pred_check_branch
      %389 = sbr.rel (0) target = $region37
    $region36: #{gcnn_forward.7} parent=1 // pred_region
      _
    $region37: #{gcnn_forward.7} parent=1 // pred_fallthru
      _
    // Predicated region
    $region38: #{gcnn_forward.7} parent=1 // pred_check
      _
    $region39: #{gcnn_forward.7} parent=1 // pred_check_branch
      %391 = sbr.rel (0) target = $region41
    $region40: #{gcnn_forward.7} parent=1 // pred_region
      %392 = dma.done [#allocation3], 16
    $region41: #{gcnn_forward.7} parent=1 // pred_fallthru
      _
    %393 = vsyncpa [#allocation3], 1

// kernel: gcnn_forward.4
$region0: #{gcnn_forward.4}
  #allocation0 [shape = 'u32[]', space=smem, size = 0x4, offset = 0x4, fixed_abs, tag = 'smem constant byte address 0x4 - core index']
  #allocation1 [shape = 'u32[144,128]{1,0:T(1,128)}', space=vmem, size = 0x12000, scoped, tag = 'internal scratch']
  %s0 = inlined_call_operand.vmem [shape: f32[2,1,16,10], index: 0, kind: input, shape index: {}]
  %s1 = inlined_call_operand.vmem [shape: bf16[32,16], index: 1, kind: input, shape index: {}]
  %s2 = inlined_call_operand.vmem [shape: f32[32,1], index: 2, kind: input, shape index: {}]
  %s3 = inlined_call_operand.vmem [shape: bf16[8,16], index: 3, kind: input, shape index: {}]
  %s4 = inlined_call_operand.vmem [shape: f32[8,1], index: 4, kind: input, shape index: {}]
  %s5 = inlined_call_operand.vmem [shape: bf16[8,24], index: 5, kind: input, shape index: {}]
  %s6 = inlined_call_operand.vmem [shape: f32[8,1], index: 6, kind: input, shape index: {}]
  %s7 = inlined_call_operand.vmem [shape: bf16[64,8], index: 7, kind: input, shape index: {}]
  %s8 = inlined_call_operand.vmem [shape: f32[64,1], index: 8, kind: input, shape index: {}]
  %s9 = inlined_call_operand.vmem [shape: f32[2,32,8], index: 9, kind: output, shape index: {}]
  %s10 = sld [smem:[#allocation0]]
  $region69: #{gcnn_forward.4} parent=0
    _
  %s12 = ssub.s32 1, %s10
  %s13 = scalar_select 0, %s12, %s10
  loop: start=0, step=1, limit=4
  $region2: #{gcnn_forward.4} parent=0 // loop_pre_header
    _
  $region3: #{gcnn_forward.4} parent=0 // loop_header
    %s15 = sphi 0, %s19
    %p16 = scmp.ge.s32.totalorder %s15, 4
    %s22 = sphi 0, %s34
    %s23 = sphi 0, %s30
    %s24 = sphi 0, %s22
    %s25 = sphi 0, %s23
    %s26 = sphi 0, %s24
    %s27 = sphi 0, %s25
    %s39 = sphi 0, %s41
    %s42 = sphi 0, %s39
    %s43 = sphi 0, %s42
    %s59 = sphi 0, %s43
    %s63 = sphi 0, %s63
    %s65 = sphi 0, %s63
    %s66 = sphi 0, %s65
    %s80 = sphi 0, %s66
    %s84 = sphi 0, %s84
    %s86 = sphi 0, %s84
    %s87 = sphi 0, %s86
    %s101 = sphi 0, %s87
    %s105 = sphi 0, %s105
    %s107 = sphi 0, %s105
    %s108 = sphi 0, %s107
    %s122 = sphi 0, %s108
    %s126 = sphi 0, %s126
    %s128 = sphi 0, %s126
    %s129 = sphi 0, %s128
    %s143 = sphi 0, %s129
    %s147 = sphi 0, %s147
    %s149 = sphi 0, %s147
    %s150 = sphi 0, %s149
    %s164 = sphi 0, %s150
    %s168 = sphi 0, %s168
    %s170 = sphi 0, %s168
    %s171 = sphi 0, %s170
    %s185 = sphi 0, %s171
    %s189 = sphi 0, %s189
    %s191 = sphi 0, %s189
    %s192 = sphi 0, %s191
    %s206 = sphi 0, %s192
    %s210 = sphi 0, %s210
    %s212 = sphi 0, %s210
    %s213 = sphi 0, %s212
    %s227 = sphi 0, %s213
    %s235 = sphi 0, %s237
    %s238 = sphi 0, %s235
    %s239 = sphi 0, %s238
    %s255 = sphi 0, %s239
  $region4: #{gcnn_forward.4} parent=0 // loop_header_branch
    %18 = sbr.rel (%p16) target = $region8
  $region5: #{gcnn_forward.4} parent=0 // loop_body
    %s20 = ssub.s32 %s15, 1
    %s21 = ssub.s32 %s15, 2
    %s28 = sadd.s32 1, %s23
    %p29 = scmp.ge.s32.totalorder %s28, 1
    %s30 = scalar_select %p29, 0, %s28
    %s31 = sadd.s32 1, %s22
    %s32 = scalar_select %p29, %s31, %s22
    %p33 = scmp.ge.s32.totalorder %s32, 2
    %s34 = scalar_select %p33, 0, %s32
    %s35 = ssub.s32 %s22, %s34
    %s36 = ssub.s32 %s23, %s30
    %s37 = sor.u32 %s35, %s36
    %p38 = scmp.eq.s32.totalorder %s37, 0
    %s40 = sadd.s32 %s39, 1
    %s41 = scalar_select %p38, %s39, %s40
    %p44 = pneg %p38
    %p45 = scmp.eq.s32.totalorder %s15, 1
    %p46 = por %p44, %p45
    %p47 = scmp.ne.s32.totalorder %s39, %s42
    %p48 = scmp.eq.s32.totalorder %s15, 0
    %p49 = por %p47, %p48
    %p50 = scmp.ne.s32.totalorder %s39, %s42
    %p51 = scmp.eq.s32.totalorder %s20, 1
    %p52 = por %p50, %p51
    %p53 = scmp.ne.s32.totalorder %s42, %s43
    %p54 = scmp.eq.s32.totalorder %s20, 0
    %p55 = por %p53, %p54
    %p56 = scmp.ne.s32.totalorder %s42, %s43
    %p57 = scmp.eq.s32.totalorder %s21, 1
    %p58 = por %p56, %p57
    %p60 = scmp.ne.s32.totalorder %s43, %s59
    %p61 = scmp.eq.s32.totalorder %s21, 0
    %p62 = por %p60, %p61
    %s64 = sadd.s32 %s63, 1
    %p67 = scmp.eq.s32.totalorder %s15, 1
    %p68 = scmp.ne.s32.totalorder %s63, %s65
    %p69 = scmp.eq.s32.totalorder %s15, 0
    %p70 = por %p68, %p69
    %p71 = scmp.ne.s32.totalorder %s63, %s65
    %p72 = scmp.eq.s32.totalorder %s20, 1
    %p73 = por %p71, %p72
    %p74 = scmp.ne.s32.totalorder %s65, %s66
    %p75 = scmp.eq.s32.totalorder %s20, 0
    %p76 = por %p74, %p75
    %p77 = scmp.ne.s32.totalorder %s65, %s66
    %p78 = scmp.eq.s32.totalorder %s21, 1
    %p79 = por %p77, %p78
    %p81 = scmp.ne.s32.totalorder %s66, %s80
    %p82 = scmp.eq.s32.totalorder %s21, 0
    %p83 = por %p81, %p82
    %s85 = sadd.s32 %s84, 1
    %p88 = scmp.eq.s32.totalorder %s15, 1
    %p89 = scmp.ne.s32.totalorder %s84, %s86
    %p90 = scmp.eq.s32.totalorder %s15, 0
    %p91 = por %p89, %p90
    %p92 = scmp.ne.s32.totalorder %s84, %s86
    %p93 = scmp.eq.s32.totalorder %s20, 1
    %p94 = por %p92, %p93
    %p95 = scmp.ne.s32.totalorder %s86, %s87
    %p96 = scmp.eq.s32.totalorder %s20, 0
    %p97 = por %p95, %p96
    %p98 = scmp.ne.s32.totalorder %s86, %s87
    %p99 = scmp.eq.s32.totalorder %s21, 1
    %p100 = por %p98, %p99
    %p102 = scmp.ne.s32.totalorder %s87, %s101
    %p103 = scmp.eq.s32.totalorder %s21, 0
    %p104 = por %p102, %p103
    %s106 = sadd.s32 %s105, 1
    %p109 = scmp.eq.s32.totalorder %s15, 1
    %p110 = scmp.ne.s32.totalorder %s105, %s107
    %p111 = scmp.eq.s32.totalorder %s15, 0
    %p112 = por %p110, %p111
    %p113 = scmp.ne.s32.totalorder %s105, %s107
    %p114 = scmp.eq.s32.totalorder %s20, 1
    %p115 = por %p113, %p114
    %p116 = scmp.ne.s32.totalorder %s107, %s108
    %p117 = scmp.eq.s32.totalorder %s20, 0
    %p118 = por %p116, %p117
    %p119 = scmp.ne.s32.totalorder %s107, %s108
    %p120 = scmp.eq.s32.totalorder %s21, 1
    %p121 = por %p119, %p120
    %p123 = scmp.ne.s32.totalorder %s108, %s122
    %p124 = scmp.eq.s32.totalorder %s21, 0
    %p125 = por %p123, %p124
    %s127 = sadd.s32 %s126, 1
    %p130 = scmp.eq.s32.totalorder %s15, 1
    %p131 = scmp.ne.s32.totalorder %s126, %s128
    %p132 = scmp.eq.s32.totalorder %s15, 0
    %p133 = por %p131, %p132
    %p134 = scmp.ne.s32.totalorder %s126, %s128
    %p135 = scmp.eq.s32.totalorder %s20, 1
    %p136 = por %p134, %p135
    %p137 = scmp.ne.s32.totalorder %s128, %s129
    %p138 = scmp.eq.s32.totalorder %s20, 0
    %p139 = por %p137, %p138
    %p140 = scmp.ne.s32.totalorder %s128, %s129
    %p141 = scmp.eq.s32.totalorder %s21, 1
    %p142 = por %p140, %p141
    %p144 = scmp.ne.s32.totalorder %s129, %s143
    %p145 = scmp.eq.s32.totalorder %s21, 0
    %p146 = por %p144, %p145
    %s148 = sadd.s32 %s147, 1
    %p151 = scmp.eq.s32.totalorder %s15, 1
    %p152 = scmp.ne.s32.totalorder %s147, %s149
    %p153 = scmp.eq.s32.totalorder %s15, 0
    %p154 = por %p152, %p153
    %p155 = scmp.ne.s32.totalorder %s147, %s149
    %p156 = scmp.eq.s32.totalorder %s20, 1
    %p157 = por %p155, %p156
    %p158 = scmp.ne.s32.totalorder %s149, %s150
    %p159 = scmp.eq.s32.totalorder %s20, 0
    %p160 = por %p158, %p159
    %p161 = scmp.ne.s32.totalorder %s149, %s150
    %p162 = scmp.eq.s32.totalorder %s21, 1
    %p163 = por %p161, %p162
    %p165 = scmp.ne.s32.totalorder %s150, %s164
    %p166 = scmp.eq.s32.totalorder %s21, 0
    %p167 = por %p165, %p166
    %s169 = sadd.s32 %s168, 1
    %p172 = scmp.eq.s32.totalorder %s15, 1
    %p173 = scmp.ne.s32.totalorder %s168, %s170
    %p174 = scmp.eq.s32.totalorder %s15, 0
    %p175 = por %p173, %p174
    %p176 = scmp.ne.s32.totalorder %s168, %s170
    %p177 = scmp.eq.s32.totalorder %s20, 1
    %p178 = por %p176, %p177
    %p179 = scmp.ne.s32.totalorder %s170, %s171
    %p180 = scmp.eq.s32.totalorder %s20, 0
    %p181 = por %p179, %p180
    %p182 = scmp.ne.s32.totalorder %s170, %s171
    %p183 = scmp.eq.s32.totalorder %s21, 1
    %p184 = por %p182, %p183
    %p186 = scmp.ne.s32.totalorder %s171, %s185
    %p187 = scmp.eq.s32.totalorder %s21, 0
    %p188 = por %p186, %p187
    %s190 = sadd.s32 %s189, 1
    %p193 = scmp.eq.s32.totalorder %s15, 1
    %p194 = scmp.ne.s32.totalorder %s189, %s191
    %p195 = scmp.eq.s32.totalorder %s15, 0
    %p196 = por %p194, %p195
    %p197 = scmp.ne.s32.totalorder %s189, %s191
    %p198 = scmp.eq.s32.totalorder %s20, 1
    %p199 = por %p197, %p198
    %p200 = scmp.ne.s32.totalorder %s191, %s192
    %p201 = scmp.eq.s32.totalorder %s20, 0
    %p202 = por %p200, %p201
    %p203 = scmp.ne.s32.totalorder %s191, %s192
    %p204 = scmp.eq.s32.totalorder %s21, 1
    %p205 = por %p203, %p204
    %p207 = scmp.ne.s32.totalorder %s192, %s206
    %p208 = scmp.eq.s32.totalorder %s21, 0
    %p209 = por %p207, %p208
    %s211 = sadd.s32 %s210, 1
    %p214 = scmp.eq.s32.totalorder %s15, 1
    %p215 = scmp.ne.s32.totalorder %s210, %s212
    %p216 = scmp.eq.s32.totalorder %s15, 0
    %p217 = por %p215, %p216
    %p218 = scmp.ne.s32.totalorder %s210, %s212
    %p219 = scmp.eq.s32.totalorder %s20, 1
    %p220 = por %p218, %p219
    %p221 = scmp.ne.s32.totalorder %s212, %s213
    %p222 = scmp.eq.s32.totalorder %s20, 0
    %p223 = por %p221, %p222
    %p224 = scmp.ne.s32.totalorder %s212, %s213
    %p225 = scmp.eq.s32.totalorder %s21, 1
    %p226 = por %p224, %p225
    %p228 = scmp.ne.s32.totalorder %s213, %s227
    %p229 = scmp.eq.s32.totalorder %s21, 0
    %p230 = por %p228, %p229
    %s231 = ssub.s32 %s22, %s34
    %s232 = ssub.s32 %s23, %s30
    %s233 = sor.u32 %s231, %s232
    %p234 = scmp.eq.s32.totalorder %s233, 0
    %s236 = sadd.s32 %s235, 1
    %s237 = scalar_select %p234, %s235, %s236
    %p240 = pneg %p234
    %p241 = scmp.eq.s32.totalorder %s15, 1
    %p242 = por %p240, %p241
    %p243 = scmp.ne.s32.totalorder %s235, %s238
    %p244 = scmp.eq.s32.totalorder %s15, 0
    %p245 = por %p243, %p244
    %p246 = scmp.ne.s32.totalorder %s235, %s238
    %p247 = scmp.eq.s32.totalorder %s20, 1
    %p248 = por %p246, %p247
    %p249 = scmp.ne.s32.totalorder %s238, %s239
    %p250 = scmp.eq.s32.totalorder %s20, 0
    %p251 = por %p249, %p250
    %p252 = scmp.ne.s32.totalorder %s238, %s239
    %p253 = scmp.eq.s32.totalorder %s21, 1
    %p254 = por %p252, %p253
    %p256 = scmp.ne.s32.totalorder %s239, %s255
    %p257 = scmp.eq.s32.totalorder %s21, 0
    %p258 = por %p256, %p257
    %p259 = scmp.le.s32.totalorder 1, %s15
    %p260 = scmp.lt.s32.totalorder %s15, 3
    %p261 = pnand %p259, %p260
    %p262 = pneg %p261
    // Predicated region
    $region9: #{gcnn_forward.4} parent=5 // pred_check
      _
    $region10: #{gcnn_forward.4} parent=5 // pred_check_branch
      %264 = sbr.rel (%p261) target = $region12
    $region11: #{gcnn_forward.4} parent=5 // pred_region
      %s265 = ssub.s32 %s15, 1
      // Predicated region
      $region13: #{gcnn_forward.4} parent=11 // pred_check
        %p266 = pneg %p76
      $region14: #{gcnn_forward.4} parent=11 // pred_check_branch
        %268 = sbr.rel (%p266) target = $region16
      $region15: #{gcnn_forward.4} parent=11 // pred_region
        _
      $region16: #{gcnn_forward.4} parent=11 // pred_fallthru
        _
      // Predicated region
      $region17: #{gcnn_forward.4} parent=11 // pred_check
        %p269 = pneg %p97
      $region18: #{gcnn_forward.4} parent=11 // pred_check_branch
        %271 = sbr.rel (%p269) target = $region20
      $region19: #{gcnn_forward.4} parent=11 // pred_region
        _
      $region20: #{gcnn_forward.4} parent=11 // pred_fallthru
        _
      // Predicated region
      $region21: #{gcnn_forward.4} parent=11 // pred_check
        %p272 = pneg %p118
      $region22: #{gcnn_forward.4} parent=11 // pred_check_branch
        %274 = sbr.rel (%p272) target = $region24
      $region23: #{gcnn_forward.4} parent=11 // pred_region
        _
      $region24: #{gcnn_forward.4} parent=11 // pred_fallthru
        _
      // Predicated region
      $region25: #{gcnn_forward.4} parent=11 // pred_check
        %p275 = pneg %p139
      $region26: #{gcnn_forward.4} parent=11 // pred_check_branch
        %277 = sbr.rel (%p275) target = $region28
      $region27: #{gcnn_forward.4} parent=11 // pred_region
        _
      $region28: #{gcnn_forward.4} parent=11 // pred_fallthru
        _
      // Predicated region
      $region29: #{gcnn_forward.4} parent=11 // pred_check
        %p278 = pneg %p160
      $region30: #{gcnn_forward.4} parent=11 // pred_check_branch
        %280 = sbr.rel (%p278) target = $region32
      $region31: #{gcnn_forward.4} parent=11 // pred_region
        _
      $region32: #{gcnn_forward.4} parent=11 // pred_fallthru
        _
      // Predicated region
      $region33: #{gcnn_forward.4} parent=11 // pred_check
        %p281 = pneg %p181
      $region34: #{gcnn_forward.4} parent=11 // pred_check_branch
        %283 = sbr.rel (%p281) target = $region36
      $region35: #{gcnn_forward.4} parent=11 // pred_region
        _
      $region36: #{gcnn_forward.4} parent=11 // pred_fallthru
        _
      // Predicated region
      $region37: #{gcnn_forward.4} parent=11 // pred_check
        %p284 = pneg %p202
      $region38: #{gcnn_forward.4} parent=11 // pred_check_branch
        %286 = sbr.rel (%p284) target = $region40
      $region39: #{gcnn_forward.4} parent=11 // pred_region
        _
      $region40: #{gcnn_forward.4} parent=11 // pred_fallthru
        _
      // Predicated region
      $region41: #{gcnn_forward.4} parent=11 // pred_check
        %p287 = pneg %p223
      $region42: #{gcnn_forward.4} parent=11 // pred_check_branch
        %289 = sbr.rel (%p287) target = $region44
      $region43: #{gcnn_forward.4} parent=11 // pred_region
        _
      $region44: #{gcnn_forward.4} parent=11 // pred_fallthru
        _
    $region12: #{gcnn_forward.4} parent=5 // pred_fallthru
      _
    %p290 = scmp.lt.s32.totalorder %s15, 2
    // Predicated region
    $region45: #{gcnn_forward.4} parent=5 // pred_check
      %p291 = pneg %p290
    $region46: #{gcnn_forward.4} parent=5 // pred_check_branch
      %293 = sbr.rel (%p291) target = $region48
    $region47: #{gcnn_forward.4} parent=5 // pred_region
      // Predicated region
      $region49: #{gcnn_forward.4} parent=47 // pred_check
        %p294 = pneg %p49
      $region50: #{gcnn_forward.4} parent=47 // pred_check_branch
        %296 = sbr.rel (%p294) target = $region52
      $region51: #{gcnn_forward.4} parent=47 // pred_region
        %p297 = scmp.lt.s32.totalorder %s22, 1
        %s298 = scalar_select %p297, %s22, 1
        %p299 = scmp.lt.s32.totalorder %s23, 0
        %s300 = scalar_select %p299, %s23, 0
        %s301 = smul.addr %s300, 2
        %s302 = smul.addr %s298, 2
        %s303 = sadd.s32 %s301, %s302
        %s304 = smul.addr %s303, 8
        %s305 = scalar_lea.vmem %s0, %s304
      $region52: #{gcnn_forward.4} parent=47 // pred_fallthru
        _
    $region48: #{gcnn_forward.4} parent=5 // pred_fallthru
      _
    %p306 = scmp.le.s32.totalorder 1, %s15
    %p307 = scmp.lt.s32.totalorder %s15, 3
    %p308 = pnand %p306, %p307
    %p309 = pneg %p308
    // Predicated region
    $region53: #{gcnn_forward.4} parent=5 // pred_check
      _
    $region54: #{gcnn_forward.4} parent=5 // pred_check_branch
      %311 = sbr.rel (%p308) target = $region56
    $region55: #{gcnn_forward.4} parent=5 // pred_region
      %s312 = ssub.s32 %s15, 1
      %p313 = scmp.lt.s32.totalorder %s24, 1
      %s314 = scalar_select %p313, %s24, 1
      %p315 = scmp.lt.s32.totalorder %s25, 0
      %s316 = scalar_select %p315, %s25, 0
      %s317 = smul.addr %s316, 2
      %s318 = smul.addr %s314, 2
      %s319 = sadd.s32 %s317, %s318
      %s320 = smul.addr %s319, 8
      %s321 = scalar_lea.vmem %s0, %s320
      %p322 = pneg %p55
      %p323 = pneg %p52
      %p324 = pneg %p76
      %p325 = pneg %p73
      %p326 = pneg %p97
      %p327 = pneg %p94
      %p328 = pneg %p118
      %p329 = pneg %p115
      %p330 = pneg %p139
      %p331 = pneg %p136
      %p332 = pneg %p160
      %p333 = pneg %p157
      %p334 = pneg %p181
      %p335 = pneg %p178
      %p336 = pneg %p202
      %p337 = pneg %p199
      %p338 = pneg %p223
      %p339 = pneg %p220
      %p340 = pneg %p251
      %p341 = pneg %p248
      %p342 = scmp.lt.s32.totalorder %s24, 1
      %s343 = scalar_select %p342, %s24, 1
      %p344 = scmp.lt.s32.totalorder %s25, 0
      %s345 = scalar_select %p344, %s25, 0
      %s346 = smul.addr %s343, 4
      %s347 = sadd.s32 %s345, %s346
      %s348 = smul.addr %s347, 8
      %s349 = scalar_lea.vmem %s9, %s348
      %p350 = scmp.lt.s32.totalorder %s24, 1
      %s351 = scalar_select %p350, %s24, 1
      %p352 = scmp.lt.s32.totalorder %s25, 0
      %s353 = scalar_select %p352, %s25, 0
      %s354 = smul.addr %s353, 2
      %s355 = smul.addr %s351, 2
      %s356 = sadd.s32 %s354, %s355
      %s357 = smul.addr %s356, 8
      %s358 = scalar_lea.vmem %s0, %s357
      %p359 = scmp.lt.s32.totalorder %s24, 1
      %s360 = scalar_select %p359, %s24, 1
      %p361 = scmp.lt.s32.totalorder %s25, 0
      %s362 = scalar_select %p361, %s25, 0
      %s363 = smul.addr %s360, 4
      %s364 = sadd.s32 %s362, %s363
      %s365 = smul.addr %s364, 8
      %s366 = scalar_lea.vmem %s9, %s365
      %v368 = vld [vmem:[%s358] sm:$0xff]
      %v369 = vld [vmem:[%s358 + $0x8] sm:$0xff]
      %v370 = vpack.c.bf16 %v369, %v368
      %v371 = vld [vmem:[%s3] sm:$0xf]
      %v372 = vld [vmem:[%s4] sm:$0xff]
      %374 = vset.pattern.permute.xlu0 0
      %375 = vperm.xlu0 %374, %v372
      %v376 = vpop.permute.xlu0 %375
      %vm378 = vcmask 130048
      %v380 = vsel %vm378, %v371, 0
      %382 = vmatprep.subr.bf16.mxu0 0
      %383 = vmatpush1.bf16.msra.mxu0 %v370
      %384 = vmatprep.subr.bf16.mxu0 0
      %385 = vmatpush1.bf16.msra.mxu0 0
      %386 = vmatprep.subr.bf16.mxu0 0
      %387 = vmatpush1.bf16.msra.mxu0 0
      %388 = vmatprep.subr.bf16.mxu0 0
      %389 = vmatpush1.bf16.msra.mxu0 0
      %390 = vmatprep.subr.bf16.mxu0 0
      %391 = vmatpush1.bf16.msra.mxu0 0
      %392 = vmatprep.subr.bf16.mxu0 0
      %393 = vmatpush1.bf16.msra.mxu0 0
      %394 = vmatprep.subr.bf16.mxu0 0
      %395 = vmatpush1.bf16.msra.mxu0 0
      %396 = vmatprep.subr.bf16.mxu0 0
      %397 = vmatpush1.bf16.msra.mxu0 0
      %398 = vmatprep.subr.bf16.mxu0 0
      %399 = vmatpush1.bf16.msra.mxu0 0
      %400 = vmatprep.subr.bf16.mxu0 0
      %401 = vmatpush1.bf16.msra.mxu0 0
      %402 = vmatprep.subr.bf16.mxu0 0
      %403 = vmatpush1.bf16.msra.mxu0 0
      %404 = vmatprep.subr.bf16.mxu0 0
      %405 = vmatpush1.bf16.msra.mxu0 0
      %406 = vmatprep.subr.bf16.mxu0 0
      %407 = vmatpush1.bf16.msra.mxu0 0
      %408 = vmatprep.subr.bf16.mxu0 0
      %409 = vmatpush1.bf16.msra.mxu0 0
      %410 = vmatprep.subr.bf16.mxu0 0
      %411 = vmatpush1.bf16.msra.mxu0 0
      %412 = vmatprep.subr.bf16.mxu0 0
      %413 = vmatpush1.bf16.msra.mxu0 0
      %414 = vmatprep.mubr.bf16.mxu0 0
      %415 = vmatmul.mubr.bf16.gmra.mrb[0].mxu0 %v380
      %v416 = vpop.f32.mrb[0].mxu0
      %v417 = vadd.f32 %v376, %v416
      %v418 = vpop.f32.mrb[0].mxu0
      %v419 = vpop.f32.mrb[0].mxu0
      %v420 = vpop.f32.mrb[0].mxu0
      %421 = vdwg.mxu0
      %423 = vrot.lane.b32.xlu0 %v417, 127
      %v424 = vpop.permute.xlu0 %423
      %426 = vrot.lane.b32.xlu0 %v417, 126
      %v427 = vpop.permute.xlu0 %426
      %v429 = vpack.c.bf16 %v424, %v417
      %v430 = vpack.c.bf16 %v427, %v427
      %v431 = vld [vmem:[%s5] sm:$0xf]
      %v432 = vld [vmem:[%s6] sm:$0xff]
      %434 = vset.pattern.permute.xlu0 0
      %435 = vperm.xlu0 %434, %v432
      %v436 = vpop.permute.xlu0 %435
      %vm438 = vcmask 195584
      %v440 = vsel %vm438, %v431, 0
      %vm442 = vcmask 1043456
      %v444 = vsel %vm442, %v430, 0
      %446 = vmatprep.subr.bf16.mxu0 0
      %447 = vmatpush1.bf16.msra.mxu0 %v429
      %448 = vmatprep.subr.bf16.mxu0 0
      %449 = vmatpush1.bf16.msra.mxu0 %v444
      %450 = vmatprep.subr.bf16.mxu0 0
      %451 = vmatpush1.bf16.msra.mxu0 0
      %452 = vmatprep.subr.bf16.mxu0 0
      %453 = vmatpush1.bf16.msra.mxu0 0
      %454 = vmatprep.subr.bf16.mxu0 0
      %455 = vmatpush1.bf16.msra.mxu0 0
      %456 = vmatprep.subr.bf16.mxu0 0
      %457 = vmatpush1.bf16.msra.mxu0 0
      %458 = vmatprep.subr.bf16.mxu0 0
      %459 = vmatpush1.bf16.msra.mxu0 0
      %460 = vmatprep.subr.bf16.mxu0 0
      %461 = vmatpush1.bf16.msra.mxu0 0
      %462 = vmatprep.subr.bf16.mxu0 0
      %463 = vmatpush1.bf16.msra.mxu0 0
      %464 = vmatprep.subr.bf16.mxu0 0
      %465 = vmatpush1.bf16.msra.mxu0 0
      %466 = vmatprep.subr.bf16.mxu0 0
      %467 = vmatpush1.bf16.msra.mxu0 0
      %468 = vmatprep.subr.bf16.mxu0 0
      %469 = vmatpush1.bf16.msra.mxu0 0
      %470 = vmatprep.subr.bf16.mxu0 0
      %471 = vmatpush1.bf16.msra.mxu0 0
      %472 = vmatprep.subr.bf16.mxu0 0
      %473 = vmatpush1.bf16.msra.mxu0 0
      %474 = vmatprep.subr.bf16.mxu0 0
      %475 = vmatpush1.bf16.msra.mxu0 0
      %476 = vmatprep.subr.bf16.mxu0 0
      %477 = vmatpush1.bf16.msra.mxu0 0
      %478 = vmatprep.mubr.bf16.mxu0 0
      %479 = vmatmul.mubr.bf16.gmra.mrb[0].mxu0 %v440
      %v480 = vpop.f32.mrb[0].mxu0
      %v481 = vadd.f32 %v436, %v480
      %v482 = vpop.f32.mrb[0].mxu0
      %v483 = vpop.f32.mrb[0].mxu0
      %v484 = vpop.f32.mrb[0].mxu0
      %485 = vdwg.mxu0
      %v486 = vld [vmem:[%s7] sm:$0xf]
      %v487 = vld [vmem:[%s7 + $0x4] sm:$0xf]
      %v488 = vld [vmem:[%s7 + $0x8] sm:$0xf]
      %v489 = vld [vmem:[%s7 + $0xc] sm:$0xf]
      %v490 = vld [vmem:[%s7 + $0x10] sm:$0xf]
      %v491 = vld [vmem:[%s7 + $0x14] sm:$0xf]
      %v492 = vld [vmem:[%s7 + $0x18] sm:$0xf]
      %v493 = vld [vmem:[%s7 + $0x1c] sm:$0xf]
      %v494 = vpack.c.bf16 %v481, %v481
      %v495 = vld [vmem:[%s8] sm:$0xff]
      %v496 = vld [vmem:[%s8 + $0x8] sm:$0xff]
      %v497 = vld [vmem:[%s8 + $0x10] sm:$0xff]
      %v498 = vld [vmem:[%s8 + $0x18] sm:$0xff]
      %v499 = vld [vmem:[%s8 + $0x20] sm:$0xff]
      %v500 = vld [vmem:[%s8 + $0x28] sm:$0xff]
      %v501 = vld [vmem:[%s8 + $0x30] sm:$0xff]
      %v502 = vld [vmem:[%s8 + $0x38] sm:$0xff]
      %504 = vset.pattern.permute.xlu0 0
      %505 = vperm.xlu0 %504, %v495
      %v506 = vpop.permute.xlu0 %505
      %509 = vset.pattern.permute.xlu0 0
      %510 = vperm.xlu0 %509, %v496
      %v511 = vpop.permute.xlu0 %510
      %514 = vset.pattern.permute.xlu0 0
      %515 = vperm.xlu0 %514, %v497
      %v516 = vpop.permute.xlu0 %515
      %519 = vset.pattern.permute.xlu0 0
      %520 = vperm.xlu0 %519, %v498
      %v521 = vpop.permute.xlu0 %520
      %524 = vset.pattern.permute.xlu0 0
      %525 = vperm.xlu0 %524, %v499
      %v526 = vpop.permute.xlu0 %525
      %529 = vset.pattern.permute.xlu0 0
      %530 = vperm.xlu0 %529, %v500
      %v531 = vpop.permute.xlu0 %530
      %534 = vset.pattern.permute.xlu0 0
      %535 = vperm.xlu0 %534, %v501
      %v536 = vpop.permute.xlu0 %535
      %539 = vset.pattern.permute.xlu0 0
      %540 = vperm.xlu0 %539, %v502
      %v541 = vpop.permute.xlu0 %540
      %v551 = vunpack.c.l.b16 %v486
      %v552 = vunpack.c.l.b16 %v487
      %v553 = vunpack.c.l.b16 %v488
      %v554 = vunpack.c.l.b16 %v489
      %v555 = vunpack.c.l.b16 %v490
      %v556 = vunpack.c.l.b16 %v491
      %v557 = vunpack.c.l.b16 %v492
      %v558 = vunpack.c.l.b16 %v493
      %v559 = vpack.c.b16 %v552, %v551
      %v560 = vpack.c.b16 %v554, %v553
      %v561 = vpack.c.b16 %v556, %v555
      %v562 = vpack.c.b16 %v558, %v557
      %vm563 = vcmask 64512
      %v565 = vsel %vm563, %v559, 0
      %v568 = vsel %vm563, %v560, 0
      %v571 = vsel %vm563, %v561, 0
      %v574 = vsel %vm563, %v562, 0
      %v577 = vsel %vm442, %v494, 0
      %579 = vmatprep.subr.bf16.mxu0 0
      %580 = vmatpush1.bf16.msra.mxu0 %v577
      %581 = vmatprep.subr.bf16.mxu0 0
      %582 = vmatpush1.bf16.msra.mxu0 0
      %583 = vmatprep.subr.bf16.mxu0 0
      %584 = vmatpush1.bf16.msra.mxu0 0
      %585 = vmatprep.subr.bf16.mxu0 0
      %586 = vmatpush1.bf16.msra.mxu0 0
      %587 = vmatprep.subr.bf16.mxu0 0
      %588 = vmatpush1.bf16.msra.mxu0 0
      %589 = vmatprep.subr.bf16.mxu0 0
      %590 = vmatpush1.bf16.msra.mxu0 0
      %591 = vmatprep.subr.bf16.mxu0 0
      %592 = vmatpush1.bf16.msra.mxu0 0
      %593 = vmatprep.subr.bf16.mxu0 0
      %594 = vmatpush1.bf16.msra.mxu0 0
      %595 = vmatprep.subr.bf16.mxu0 0
      %596 = vmatpush1.bf16.msra.mxu0 0
      %597 = vmatprep.subr.bf16.mxu0 0
      %598 = vmatpush1.bf16.msra.mxu0 0
      %599 = vmatprep.subr.bf16.mxu0 0
      %600 = vmatpush1.bf16.msra.mxu0 0
      %601 = vmatprep.subr.bf16.mxu0 0
      %602 = vmatpush1.bf16.msra.mxu0 0
      %603 = vmatprep.subr.bf16.mxu0 0
      %604 = vmatpush1.bf16.msra.mxu0 0
      %605 = vmatprep.subr.bf16.mxu0 0
      %606 = vmatpush1.bf16.msra.mxu0 0
      %607 = vmatprep.subr.bf16.mxu0 0
      %608 = vmatpush1.bf16.msra.mxu0 0
      %609 = vmatprep.subr.bf16.mxu0 0
      %610 = vmatpush1.bf16.msra.mxu0 0
      %611 = vmatprep.mubr.bf16.mxu0 0
      %612 = vmatmul.mubr.bf16.gmra.mrb[0].mxu0 %v565
      %v613 = vpop.f32.mrb[0].mxu0
      %v614 = vadd.f32 %v506, %v613
      %v615 = vpop.f32.mrb[0].mxu0
      %v616 = vpop.f32.mrb[0].mxu0
      %v617 = vadd.f32 %v511, %v616
      %v618 = vpop.f32.mrb[0].mxu0
      %619 = vmatprep.mubr.bf16.mxu0 0
      %620 = vmatmul.mubr.bf16.gmra.mrb[0].mxu0 %v568
      %v621 = vpop.f32.mrb[0].mxu0
      %v622 = vadd.f32 %v516, %v621
      %v623 = vpop.f32.mrb[0].mxu0
      %v624 = vpop.f32.mrb[0].mxu0
      %v625 = vadd.f32 %v521, %v624
      %v626 = vpop.f32.mrb[0].mxu0
      %627 = vmatprep.mubr.bf16.mxu0 0
      %628 = vmatmul.mubr.bf16.gmra.mrb[0].mxu0 %v571
      %v629 = vpop.f32.mrb[0].mxu0
      %v630 = vadd.f32 %v526, %v629
      %v631 = vpop.f32.mrb[0].mxu0
      %v632 = vpop.f32.mrb[0].mxu0
      %v633 = vadd.f32 %v531, %v632
      %v634 = vpop.f32.mrb[0].mxu0
      %635 = vmatprep.mubr.bf16.mxu0 0
      %636 = vmatmul.mubr.bf16.gmra.mrb[0].mxu0 %v574
      %v637 = vpop.f32.mrb[0].mxu0
      %v638 = vadd.f32 %v536, %v637
      %v639 = vpop.f32.mrb[0].mxu0
      %v640 = vpop.f32.mrb[0].mxu0
      %v641 = vadd.f32 %v541, %v640
      %v642 = vpop.f32.mrb[0].mxu0
      %643 = vdwg.mxu0
      %v644 = vld [vmem:[%s1] sm:$0xf]
      %v645 = vld [vmem:[%s1 + $0x4] sm:$0xf]
      %v646 = vld [vmem:[%s1 + $0x8] sm:$0xf]
      %v647 = vld [vmem:[%s1 + $0xc] sm:$0xf]
      %v648 = vld [vmem:[%s2] sm:$0xff]
      %v649 = vld [vmem:[%s2 + $0x8] sm:$0xff]
      %v650 = vld [vmem:[%s2 + $0x10] sm:$0xff]
      %v651 = vld [vmem:[%s2 + $0x18] sm:$0xff]
      %653 = vset.pattern.permute.xlu0 0
      %654 = vperm.xlu0 %653, %v648
      %v655 = vpop.permute.xlu0 %654
      %658 = vset.pattern.permute.xlu0 0
      %659 = vperm.xlu0 %658, %v649
      %v660 = vpop.permute.xlu0 %659
      %663 = vset.pattern.permute.xlu0 0
      %664 = vperm.xlu0 %663, %v650
      %v665 = vpop.permute.xlu0 %664
      %668 = vset.pattern.permute.xlu0 0
      %669 = vperm.xlu0 %668, %v651
      %v670 = vpop.permute.xlu0 %669
      %v676 = vunpack.c.l.b16 %v644
      %v677 = vunpack.c.l.b16 %v645
      %v678 = vunpack.c.l.b16 %v646
      %v679 = vunpack.c.l.b16 %v647
      %v680 = vpack.c.b16 %v677, %v676
      %v681 = vpack.c.b16 %v679, %v678
      %683 = vrot.lane.b32.xlu0 %v370, 126
      %v684 = vpop.permute.xlu0 %683
      %v687 = vsel %vm378, %v680, 0
      %v690 = vsel %vm378, %v681, 0
      %692 = vmatprep.subr.bf16.mxu0 0
      %693 = vmatpush1.bf16.msra.mxu0 %v684
      %694 = vmatprep.subr.bf16.mxu0 0
      %695 = vmatpush1.bf16.msra.mxu0 0
      %696 = vmatprep.subr.bf16.mxu0 0
      %697 = vmatpush1.bf16.msra.mxu0 0
      %698 = vmatprep.subr.bf16.mxu0 0
      %699 = vmatpush1.bf16.msra.mxu0 0
      %700 = vmatprep.subr.bf16.mxu0 0
      %701 = vmatpush1.bf16.msra.mxu0 0
      %702 = vmatprep.subr.bf16.mxu0 0
      %703 = vmatpush1.bf16.msra.mxu0 0
      %704 = vmatprep.subr.bf16.mxu0 0
      %705 = vmatpush1.bf16.msra.mxu0 0
      %706 = vmatprep.subr.bf16.mxu0 0
      %707 = vmatpush1.bf16.msra.mxu0 0
      %708 = vmatprep.subr.bf16.mxu0 0
      %709 = vmatpush1.bf16.msra.mxu0 0
      %710 = vmatprep.subr.bf16.mxu0 0
      %711 = vmatpush1.bf16.msra.mxu0 0
      %712 = vmatprep.subr.bf16.mxu0 0
      %713 = vmatpush1.bf16.msra.mxu0 0
      %714 = vmatprep.subr.bf16.mxu0 0
      %715 = vmatpush1.bf16.msra.mxu0 0
      %716 = vmatprep.subr.bf16.mxu0 0
      %717 = vmatpush1.bf16.msra.mxu0 0
      %718 = vmatprep.subr.bf16.mxu0 0
      %719 = vmatpush1.bf16.msra.mxu0 0
      %720 = vmatprep.subr.bf16.mxu0 0
      %721 = vmatpush1.bf16.msra.mxu0 0
      %722 = vmatprep.subr.bf16.mxu0 0
      %723 = vmatpush1.bf16.msra.mxu0 0
      %724 = vmatprep.mubr.bf16.mxu0 0
      %725 = vmatmul.mubr.bf16.gmra.mrb[0].mxu0 %v687
      %v726 = vpop.f32.mrb[0].mxu0
      %v727 = vadd.f32 %v655, %v726
      %v728 = vpop.f32.mrb[0].mxu0
      %v729 = vpop.f32.mrb[0].mxu0
      %v730 = vadd.f32 %v660, %v729
      %v731 = vpop.f32.mrb[0].mxu0
      %732 = vmatprep.mubr.bf16.mxu0 0
      %733 = vmatmul.mubr.bf16.gmra.mrb[0].mxu0 %v690
      %v734 = vpop.f32.mrb[0].mxu0
      %v735 = vadd.f32 %v665, %v734
      %v736 = vpop.f32.mrb[0].mxu0
      %v737 = vpop.f32.mrb[0].mxu0
      %v738 = vadd.f32 %v670, %v737
      %v739 = vpop.f32.mrb[0].mxu0
      %740 = vdwg.mxu0
      %v741 = vxor.u32 %v630, 2147483648
      %v742 = vxor.u32 %v633, 2147483648
      %v743 = vxor.u32 %v638, 2147483648
      %v744 = vxor.u32 %v641, 2147483648
      %v745 = vmul.f32 %v741, 1.442695
      %v746 = vpow.pop %v745
      %v747 = vmul.f32 %v742, 1.442695
      %v748 = vpow.pop %v747
      %v749 = vmul.f32 %v743, 1.442695
      %v750 = vpow.pop %v749
      %v751 = vmul.f32 %v744, 1.442695
      %v752 = vpow.pop %v751
      %v753 = vadd.f32 %v746, 1.0
      %v754 = vadd.f32 %v748, 1.0
      %v755 = vadd.f32 %v750, 1.0
      %v756 = vadd.f32 %v752, 1.0
      %v757 = vrcp.pop %v753
      %v758 = vmul.f32 1.0, %v757
      %v759 = vrcp.pop %v754
      %v760 = vmul.f32 1.0, %v759
      %v761 = vrcp.pop %v755
      %v762 = vmul.f32 1.0, %v761
      %v763 = vrcp.pop %v756
      %v764 = vmul.f32 1.0, %v763
      %v765 = vmul.f32 %v614, %v758
      %v766 = vmul.f32 %v617, %v760
      %v767 = vmul.f32 %v622, %v762
      %v768 = vmul.f32 %v625, %v764
      %v769 = vadd.f32 %v765, %v727
      %v770 = vadd.f32 %v766, %v730
      %v771 = vadd.f32 %v767, %v735
      %v772 = vadd.f32 %v768, %v738
      %773 = vst.msk [vmem:[%s366] sm:$0xff] %vm563, %v769
      %774 = vst.msk [vmem:[%s366 + $0x8] sm:$0xff] %vm563, %v770
      %775 = vst.msk [vmem:[%s366 + $0x10] sm:$0xff] %vm563, %v771
      %776 = vst.msk [vmem:[%s366 + $0x18] sm:$0xff] %vm563, %v772
      %p777 = scmp.lt.s32.totalorder %s24, 1
      %s778 = scalar_select %p777, %s24, 1
      %p779 = scmp.lt.s32.totalorder %s25, 0
      %s780 = scalar_select %p779, %s25, 0
      %s781 = smul.addr %s778, 4
      %s782 = sadd.s32 %s780, %s781
      %s783 = smul.addr %s782, 8
      %s784 = scalar_lea.vmem %s9, %s783
      // Predicated region
      $region57: #{gcnn_forward.4} parent=55 // pred_check
        %p785 = pneg %p248
      $region58: #{gcnn_forward.4} parent=55 // pred_check_branch
        %787 = sbr.rel (%p785) target = $region60
      $region59: #{gcnn_forward.4} parent=55 // pred_region
        _
      $region60: #{gcnn_forward.4} parent=55 // pred_fallthru
        _
    $region56: #{gcnn_forward.4} parent=5 // pred_fallthru
      _
    %p788 = scmp.le.s32.totalorder 2, %s15
    // Predicated region
    $region61: #{gcnn_forward.4} parent=5 // pred_check
      %p789 = pneg %p788
    $region62: #{gcnn_forward.4} parent=5 // pred_check_branch
      %791 = sbr.rel (%p789) target = $region64
    $region63: #{gcnn_forward.4} parent=5 // pred_region
      %s792 = ssub.s32 %s15, 2
      // Predicated region
      $region65: #{gcnn_forward.4} parent=63 // pred_check
        %p793 = pneg %p254
      $region66: #{gcnn_forward.4} parent=63 // pred_check_branch
        %795 = sbr.rel (%p793) target = $region68
      $region67: #{gcnn_forward.4} parent=63 // pred_region
        %p796 = scmp.lt.s32.totalorder %s26, 1
        %s797 = scalar_select %p796, %s26, 1
        %p798 = scmp.lt.s32.totalorder %s27, 0
        %s799 = scalar_select %p798, %s27, 0
        %s800 = smul.addr %s797, 4
        %s801 = sadd.s32 %s799, %s800
        %s802 = smul.addr %s801, 8
        %s803 = scalar_lea.vmem %s9, %s802
      $region68: #{gcnn_forward.4} parent=63 // pred_fallthru
        _
    $region64: #{gcnn_forward.4} parent=5 // pred_fallthru
      _
  $region6: #{gcnn_forward.4} parent=0 // loop_footer
    %s19 = sadd.s32 1, %s15
  $region7: #{gcnn_forward.4} parent=0 // loop_footer_branch
    %14 = sbr.rel target = $region3
  $region8: #{gcnn_forward.4} parent=0 // loop_exit
    _

</llo_original>
